<compile_context>
chip_gen: v5e
topology: v5e:2x2
jax: 0.10.0
libtpu: 0.0.40
codegen_flags: <defaults>
</compile_context>

<pallas_src>
import functools

import jax
import jax.numpy as jnp
from jax.experimental import pallas as pl
from jax.experimental.pallas import tpu as pltpu

SNAC_VOCAB_SIZE = 4096
LN_EPS = 1e-5


def _default_vmem_limit():
    try:
        cap = int(pltpu.get_tpu_info().vmem_capacity_bytes)
    except Exception:
        cap = 64 * 1024 * 1024
    return max(32 * 1024 * 1024, int(cap * 0.8))


# ----------------------------- in-kernel helpers -----------------------------

def _layernorm(x, g, b, eps):
    mu = jnp.mean(x, axis=-1, keepdims=True)
    var = jnp.mean((x - mu) ** 2, axis=-1, keepdims=True)
    return (x - mu) * jax.lax.rsqrt(var + eps) * g + b


def _elu_p1(x):
    # F.elu(x) + 1  ==  x + 1 for x > 0, exp(x) otherwise
    return jnp.where(x > 0.0, x + 1.0, jnp.exp(jnp.minimum(x, 0.0)))


def _mish(x):
    # x * tanh(softplus(x)); softplus saturates to x for large x
    sp = jnp.where(x > 20.0, x, jnp.log(1.0 + jnp.exp(jnp.minimum(x, 20.0))))
    return x * jnp.tanh(sp)


# --------------------- fused InfiniDecoderLayer stack kernel ------------------

def decoder_stack_kernel(x_ref, wq_ref, wk_ref, wv_ref, wo_ref,
                         fc1w_ref, fc2w_ref, vecs_ref, fc1b_ref,
                         cos_ref, sinr_ref,
                         out_ref, x_acc,
                         *, batch_block, seq_len, num_heads, head_dim,
                         eps, use_roll):
    layer = pl.program_id(1)
    n_layers = pl.num_programs(1)
    BB, S = batch_block, seq_len
    H, Dh = num_heads, head_dim
    D = H * Dh
    half = D // 2
    bf16 = jnp.bfloat16

    # ---- carried activation (f32): init from the kernel input on layer 0 ----
    @pl.when(layer == 0)
    def _():
        x_acc[...] = x_ref[...]

    x = x_acc[...]                                          # (BB*S, D) f32

    # ---- packed per-layer vectors: [ln1_g, ln1_b, ln2_g, ln2_b, fc2_b, gvec]
    vecs = vecs_ref[...]                                    # (6, D) f32
    ln1_g, ln1_b = vecs[0:1, :], vecs[1:2, :]
    ln2_g, ln2_b = vecs[2:3, :], vecs[3:4, :]
    fc2_b, gvec = vecs[4:5, :], vecs[5:6, :]

    # ---- self_attn_layer_norm + q/k/v projections over all BB*S rows ----
    xn = _layernorm(x, ln1_g, ln1_b, eps)
    xn_b = xn.astype(bf16)
    q = jnp.dot(xn_b, wq_ref[...], preferred_element_type=jnp.float32)
    k = jnp.dot(xn_b, wk_ref[...], preferred_element_type=jnp.float32)
    v = jnp.dot(xn_b, wv_ref[...], preferred_element_type=jnp.float32)

    # ---- RoPE over the full hidden dim (rotary_dim == hidden_size); the
    #      rotate_half sign is pre-folded into the sin table ----
    cos = cos_ref[...]                                      # (BB*S, D)
    sinr = sinr_ref[...]

    def rope(t):
        if use_roll:
            rot = pltpu.roll(t, half, -1)                   # XLU lane rotation
        else:
            rot = jnp.concatenate([t[:, half:], t[:, :half]], axis=-1)
        return t * cos + rot * sinr

    q = rope(q)
    k = rope(k)

    scale = 1.0 / (Dh ** 0.5)

    def split_heads(t):                                     # (S, D) -> (H, S, Dh)
        return jnp.stack([t[:, h * Dh:(h + 1) * Dh] for h in range(H)], axis=0)

    combined_rows = []
    for b in range(BB):                                     # static small loop
        r0 = b * S
        qh = split_heads(q[r0:r0 + S, :])
        kh = split_heads(k[r0:r0 + S, :])
        vh = split_heads(v[r0:r0 + S, :])
        vh_b = vh.astype(bf16)

        # Infini memory: build from this segment, then retrieve.
        ke = _elu_p1(kh)                                    # (H, S, Dh)
        qe = _elu_p1(qh)
        mem = jnp.einsum("hsd,hse->hde", ke.astype(bf16), vh_b,
                         preferred_element_type=jnp.float32)        # (H, Dh, Dh)
        norm = jnp.sum(ke, axis=1)                                   # (H, Dh)
        mem_out = jnp.einsum("hsd,hde->hse", qe.astype(bf16),
                             mem.astype(bf16),
                             preferred_element_type=jnp.float32)     # (H, S, Dh)
        denom = jnp.sum(qe * norm[:, None, :], axis=-1, keepdims=True)
        mem_out = mem_out / denom                                    # exact div

        # Standard non-causal softmax attention (mask=None); scale folded in q.
        q_att = (qh * scale).astype(bf16)
        scores = jnp.einsum("hqd,hkd->hqk", q_att, kh.astype(bf16),
                            preferred_element_type=jnp.float32)      # (H, S, S)
        m = jnp.max(scores, axis=-1, keepdims=True)
        p = jnp.exp(scores - m)
        p = p / jnp.sum(p, axis=-1, keepdims=True)                   # exact div
        attn = jnp.einsum("hqk,hkd->hqd", p.astype(bf16), vh_b,
                          preferred_element_type=jnp.float32)        # (H, S, Dh)

        # merge heads to lane-dense (S, D), blend with sigmoid(gate)
        mem_sd = jnp.concatenate([mem_out[h] for h in range(H)], axis=-1)
        attn_sd = jnp.concatenate([attn[h] for h in range(H)], axis=-1)
        combined_rows.append(gvec * mem_sd + (1.0 - gvec) * attn_sd)

    combined = (combined_rows[0] if BB == 1
                else jnp.concatenate(combined_rows, axis=0))         # (BB*S, D)

    attn_out = jnp.dot(combined.astype(bf16), wo_ref[...],
                       preferred_element_type=jnp.float32)
    x = x + attn_out                                        # residual (dropout=id)

    # ---- final_layer_norm + MLP (mish) over all BB*S rows ----
    xn2 = _layernorm(x, ln2_g, ln2_b, eps)
    h1 = jnp.dot(xn2.astype(bf16), fc1w_ref[...],
                 preferred_element_type=jnp.float32) + fc1b_ref[...]
    h1 = _mish(h1)
    h2 = jnp.dot(h1.astype(bf16), fc2w_ref[...],
                 preferred_element_type=jnp.float32) + fc2_b
    x = x + h2

    x_acc[...] = x

    @pl.when(layer == n_layers - 1)
    def _():
        out_ref[...] = x.astype(out_ref.dtype)


def run_decoder_stack(x, p, *, num_heads, head_dim, vmem_limit=None):
    B, S, D = x.shape
    L = p["wq"].shape[0]
    I = p["fc1_w"].shape[2]
    if vmem_limit is None:
        vmem_limit = _default_vmem_limit()

    # Batch grouping: NB parallel groups (feeds both TCs on 2-TC chips) while
    # per-layer weights are streamed only NB*L times instead of B*L.
    NB = 2 if (B >= 2 and B % 2 == 0 and ((B // 2) * S) % 8 == 0) else 1
    BB = B // NB
    R = BB * S

    x_flat = x.reshape(B * S, D)
    cos_t = jnp.tile(p["cos"], (BB, 1))                     # (BB*S, D)
    sin_t = jnp.tile(p["sin_rot"], (BB, 1))

    def per_layer_3d(r, c):
        return pl.BlockSpec((None, r, c), lambda g, l: (l, 0, 0))

    def shared_2d(r, c):
        return pl.BlockSpec((r, c), lambda g, l: (0, 0))

    in_specs = [
        pl.BlockSpec((R, D), lambda g, l: (g, 0)),          # x rows (batch group)
        per_layer_3d(D, D), per_layer_3d(D, D),             # wq, wk
        per_layer_3d(D, D), per_layer_3d(D, D),             # wv, wo
        per_layer_3d(D, I), per_layer_3d(I, D),             # fc1_w, fc2_w
        per_layer_3d(6, D),                                 # packed ln/bias/gate vecs
        per_layer_3d(1, I),                                 # fc1_b
        shared_2d(R, D), shared_2d(R, D),                   # cos, sin_rot (shared)
    ]

    out_flat = pl.pallas_call(
        functools.partial(decoder_stack_kernel,
                          batch_block=BB, seq_len=S,
                          num_heads=num_heads, head_dim=head_dim,
                          eps=LN_EPS, use_roll=(D % 256 == 0)),
        out_shape=jax.ShapeDtypeStruct((B * S, D), jnp.bfloat16),
        grid=(NB, L),
        in_specs=in_specs,
        out_specs=pl.BlockSpec((R, D), lambda g, l: (g, 0)),
        scratch_shapes=[pltpu.VMEM((R, D), jnp.float32)],   # f32 residual stream
        compiler_params=pltpu.CompilerParams(
            dimension_semantics=("parallel", "arbitrary"),
            vmem_limit_bytes=vmem_limit),
    )(x_flat, p["wq"], p["wk"], p["wv"], p["wo"],
      p["fc1_w"], p["fc2_w"], p["vecs"], p["fc1_b"],
      cos_t, sin_t)
    return out_flat                                         # (B*S, D) bf16


# ------------------------------ snac_proj kernel ------------------------------

def snac_proj_kernel(x_ref, w_ref, b_ref, out_ref):
    out_ref[...] = (jnp.dot(x_ref[...], w_ref[...],
                            preferred_element_type=jnp.float32) + b_ref[...])


def run_snac_proj(x_flat, w, b, *, vmem_limit=None):
    R, D = x_flat.shape
    V = w.shape[1]
    if vmem_limit is None:
        vmem_limit = _default_vmem_limit()

    TV = next(t for t in (1024, 512, 256, 128, V) if V % t == 0)
    TM = R
    for t in (512, 256, 128):
        if R > t and R % t == 0:
            TM = t
            break

    # Row axis innermost so the vocab-weight tile stays resident across rows.
    return pl.pallas_call(
        snac_proj_kernel,
        out_shape=jax.ShapeDtypeStruct((R, V), jnp.float32),
        grid=(V // TV, R // TM),
        in_specs=[
            pl.BlockSpec((TM, D), lambda v, r: (r, 0)),
            pl.BlockSpec((D, TV), lambda v, r: (0, v)),     # resident across r
            pl.BlockSpec((1, TV), lambda v, r: (0, v)),
        ],
        out_specs=pl.BlockSpec((TM, TV), lambda v, r: (r, v)),
        compiler_params=pltpu.CompilerParams(
            dimension_semantics=("parallel", "parallel"),
            vmem_limit_bytes=vmem_limit),
    )(x_flat, w, b)


# ------------------------------ model assembly -------------------------------

def make_params(key, *, num_layers, hidden, intermediate, num_heads, seq_len):
    D, I, H, L, S = hidden, intermediate, num_heads, num_layers, seq_len
    head_dim = D // H
    half = D // 2
    scale = 0.02

    # RoPE tables (rotary_dim == hidden_size); rotate_half sign folded into sin.
    inv_freq = 1.0 / (10000.0 ** (jnp.arange(0, D, 2, dtype=jnp.float32) / D))
    t = jnp.arange(S, dtype=jnp.float32)
    freqs = jnp.einsum("i,j->ij", t, inv_freq)              # (S, D/2)
    emb = jnp.concatenate([freqs, freqs], axis=-1)          # (S, D)
    cos = jnp.cos(emb)
    sign = jnp.concatenate([-jnp.ones((half,), jnp.float32),
                            jnp.ones((half,), jnp.float32)])
    sin_rot = jnp.sin(emb) * sign[None, :]

    def rnd(k, shape):
        return (scale * jax.random.normal(k, shape, jnp.float32)).astype(jnp.bfloat16)

    keys = jax.random.split(key, 6 * L + 1)
    wq, wk, wv, wo, fc1w, fc2w = [], [], [], [], [], []
    for l in range(L):
        base = 6 * l
        wq.append(rnd(keys[base + 0], (D, D)))
        wk.append(rnd(keys[base + 1], (D, D)))
        wv.append(rnd(keys[base + 2], (D, D)))
        wo.append(rnd(keys[base + 3], (D, D)))
        fc1w.append(rnd(keys[base + 4], (D, I)))
        fc2w.append(rnd(keys[base + 5], (I, D)))
    snac_w = rnd(keys[6 * L], (D, SNAC_VOCAB_SIZE))

    gate = jnp.zeros((L, H), jnp.float32)                   # nn.Parameter init 0.0
    gvec = jnp.repeat(jax.nn.sigmoid(gate), head_dim, axis=-1)       # (L, D)

    ones = jnp.ones((L, D), jnp.float32)
    zeros = jnp.zeros((L, D), jnp.float32)
    # packed per-layer vectors: [ln1_g, ln1_b, ln2_g, ln2_b, fc2_b, gvec]
    vecs = jnp.stack([ones, zeros, ones, zeros, zeros, gvec], axis=1)  # (L, 6, D)

    return dict(
        wq=jnp.stack(wq), wk=jnp.stack(wk), wv=jnp.stack(wv), wo=jnp.stack(wo),
        fc1_w=jnp.stack(fc1w), fc1_b=jnp.zeros((L, 1, I), jnp.float32),
        fc2_w=jnp.stack(fc2w),
        vecs=vecs, cos=cos, sin_rot=sin_rot,
        snac_w=snac_w, snac_b=jnp.zeros((1, SNAC_VOCAB_SIZE), jnp.float32),
    )


def snac_generator_forward(hidden_states, params, *, num_heads, head_dim):
    B, S, _ = hidden_states.shape
    x_flat = run_decoder_stack(hidden_states, params,
                               num_heads=num_heads, head_dim=head_dim)
    logits_flat = run_snac_proj(x_flat, params["snac_w"], params["snac_b"])
    return logits_flat.reshape(B, S, SNAC_VOCAB_SIZE)


# ----------------------------------- main -------------------------------------

if __name__ == "__main__":
    B, S = 2, 8
    HIDDEN, HEADS, INTER, LAYERS = 32, 4, 64, 2
    HEAD_DIM = HIDDEN // HEADS

    key = jax.random.PRNGKey(0)
    key, kx = jax.random.split(key)
    hidden_states = jax.random.normal(kx, (B, S, HIDDEN), jnp.float32)

    params = make_params(key, num_layers=LAYERS, hidden=HIDDEN,
                         intermediate=INTER, num_heads=HEADS, seq_len=S)

    logits = snac_generator_forward(hidden_states, params,
                                    num_heads=HEADS, head_dim=HEAD_DIM)
    logits = jax.block_until_ready(logits)
    assert logits.shape == (B, S, SNAC_VOCAB_SIZE)
    print("KERNEL_OK")
</pallas_src>

<mosaic_0001>
module attributes {stable_mosaic.version = 11 : i64} {
  func.func @decoder_stack_kernel(%arg0: i32, %arg1: i32, %arg2: memref<8x32xf32, #tpu.memory_space<vmem>>, %arg3: memref<1x32x32xbf16, #tpu.memory_space<vmem>>, %arg4: memref<1x32x32xbf16, #tpu.memory_space<vmem>>, %arg5: memref<1x32x32xbf16, #tpu.memory_space<vmem>>, %arg6: memref<1x32x32xbf16, #tpu.memory_space<vmem>>, %arg7: memref<1x32x64xbf16, #tpu.memory_space<vmem>>, %arg8: memref<1x64x32xbf16, #tpu.memory_space<vmem>>, %arg9: memref<1x6x32xf32, #tpu.memory_space<vmem>>, %arg10: memref<1x1x64xf32, #tpu.memory_space<vmem>>, %arg11: memref<8x32xf32, #tpu.memory_space<vmem>>, %arg12: memref<8x32xf32, #tpu.memory_space<vmem>>, %arg13: memref<8x32xbf16, #tpu.memory_space<vmem>>, %arg14: memref<8x32xf32, #tpu.memory_space<vmem>>) attributes {dimension_semantics = [#tpu.dimension_semantics<parallel>, #tpu.dimension_semantics<arbitrary>], iteration_bounds = array<i64: 2, 2>, scalar_prefetch = 0 : i64, scratch_operands = 1 : i64, tpu.core_type = #tpu.core_type<tc>, window_params = [{transform_indices = @transform_0, window_bounds = array<i64: 8, 32>}, {transform_indices = @transform_1, window_bounds = array<i64: 1, 32, 32>}, {transform_indices = @transform_2, window_bounds = array<i64: 1, 32, 32>}, {transform_indices = @transform_3, window_bounds = array<i64: 1, 32, 32>}, {transform_indices = @transform_4, window_bounds = array<i64: 1, 32, 32>}, {transform_indices = @transform_5, window_bounds = array<i64: 1, 32, 64>}, {transform_indices = @transform_6, window_bounds = array<i64: 1, 64, 32>}, {transform_indices = @transform_7, window_bounds = array<i64: 1, 6, 32>}, {transform_indices = @transform_8, window_bounds = array<i64: 1, 1, 64>}, {pipeline_mode = #tpu.pipeline_mode<synchronous>, transform_indices = @transform_9, window_bounds = array<i64: 8, 32>}, {pipeline_mode = #tpu.pipeline_mode<synchronous>, transform_indices = @transform_10, window_bounds = array<i64: 8, 32>}, {transform_indices = @transform_11, window_bounds = array<i64: 8, 32>}]} {
    %c0_i32 = arith.constant 0 : i32
    %0 = arith.cmpi eq, %arg1, %c0_i32 : i32
    %1 = arith.extui %0 : i1 to i32
    %c0_i32_0 = arith.constant 0 : i32
    %2 = arith.cmpi ne, %1, %c0_i32_0 : i32
    scf.if %2 {
      %c0_67 = arith.constant 0 : index
      %c0_68 = arith.constant 0 : index
      %213 = vector.load %arg2[%c0_67, %c0_68] : memref<8x32xf32, #tpu.memory_space<vmem>>, vector<8x32xf32>
      %c0_69 = arith.constant 0 : index
      %c0_70 = arith.constant 0 : index
      %214 = vector.load %arg14[%c0_69, %c0_70] : memref<8x32xf32, #tpu.memory_space<vmem>>, vector<8x32xf32>
      tpu.vector_store %arg14[%c0_69, %c0_70], %213 {strides = array<i32>} : memref<8x32xf32, #tpu.memory_space<vmem>>, vector<8x32xf32>,
    } else {
    }
    %c0 = arith.constant 0 : index
    %c0_1 = arith.constant 0 : index
    %3 = vector.load %arg14[%c0, %c0_1] : memref<8x32xf32, #tpu.memory_space<vmem>>, vector<8x32xf32>
    %c0_2 = arith.constant 0 : index
    %c0_3 = arith.constant 0 : index
    %c0_4 = arith.constant 0 : index
    %4 = vector.load %arg9[%c0_2, %c0_3, %c0_4] : memref<1x6x32xf32, #tpu.memory_space<vmem>>, vector<1x6x32xf32>
    %5 = vector.shape_cast %4 : vector<1x6x32xf32> to vector<6x32xf32>
    %6 = vector.extract_strided_slice %5 {offsets = [0, 0], sizes = [1, 32], strides = [1, 1]} : vector<6x32xf32> to vector<1x32xf32>
    %7 = vector.extract_strided_slice %5 {offsets = [1, 0], sizes = [1, 32], strides = [1, 1]} : vector<6x32xf32> to vector<1x32xf32>
    %8 = vector.extract_strided_slice %5 {offsets = [2, 0], sizes = [1, 32], strides = [1, 1]} : vector<6x32xf32> to vector<1x32xf32>
    %9 = vector.extract_strided_slice %5 {offsets = [3, 0], sizes = [1, 32], strides = [1, 1]} : vector<6x32xf32> to vector<1x32xf32>
    %10 = vector.extract_strided_slice %5 {offsets = [4, 0], sizes = [1, 32], strides = [1, 1]} : vector<6x32xf32> to vector<1x32xf32>
    %11 = vector.extract_strided_slice %5 {offsets = [5, 0], sizes = [1, 32], strides = [1, 1]} : vector<6x32xf32> to vector<1x32xf32>
    %cst = arith.constant dense<0.000000e+00> : vector<8xf32>
    %12 = vector.multi_reduction <add>, %3, %cst [1] : vector<8x32xf32> to vector<8xf32>
    %13 = vector.shape_cast %12 : vector<8xf32> to vector<8x1xf32>
    %cst_5 = arith.constant 3.200000e+01 : f32
    %14 = vector.broadcast %cst_5 : f32 to vector<8x1xf32>
    %15 = arith.divf %13, %14 : vector<8x1xf32>
    %16 = vector.broadcast %15 : vector<8x1xf32> to vector<8x32xf32>
    %17 = arith.subf %3, %16 : vector<8x32xf32>
    %18 = arith.mulf %17, %17 : vector<8x32xf32>
    %cst_6 = arith.constant dense<0.000000e+00> : vector<8xf32>
    %19 = vector.multi_reduction <add>, %18, %cst_6 [1] : vector<8x32xf32> to vector<8xf32>
    %20 = vector.shape_cast %19 : vector<8xf32> to vector<8x1xf32>
    %cst_7 = arith.constant 3.200000e+01 : f32
    %21 = vector.broadcast %cst_7 : f32 to vector<8x1xf32>
    %22 = arith.divf %20, %21 : vector<8x1xf32>
    %23 = vector.broadcast %15 : vector<8x1xf32> to vector<8x32xf32>
    %24 = arith.subf %3, %23 : vector<8x32xf32>
    %cst_8 = arith.constant 9.99999974E-6 : f32
    %25 = vector.broadcast %cst_8 : f32 to vector<8x1xf32>
    %26 = arith.addf %22, %25 : vector<8x1xf32>
    %27 = math.rsqrt %26 : vector<8x1xf32>
    %28 = vector.broadcast %27 : vector<8x1xf32> to vector<8x32xf32>
    %29 = arith.mulf %24, %28 : vector<8x32xf32>
    %30 = vector.broadcast %6 : vector<1x32xf32> to vector<8x32xf32>
    %31 = arith.mulf %29, %30 : vector<8x32xf32>
    %32 = vector.broadcast %7 : vector<1x32xf32> to vector<8x32xf32>
    %33 = arith.addf %31, %32 : vector<8x32xf32>
    %34 = arith.truncf %33 : vector<8x32xf32> to vector<8x32xbf16>
    %c0_9 = arith.constant 0 : index
    %c0_10 = arith.constant 0 : index
    %c0_11 = arith.constant 0 : index
    %35 = vector.load %arg3[%c0_9, %c0_10, %c0_11] : memref<1x32x32xbf16, #tpu.memory_space<vmem>>, vector<1x32x32xbf16>
    %36 = vector.shape_cast %35 : vector<1x32x32xbf16> to vector<32x32xbf16>
    %cst_12 = arith.constant dense<0.000000e+00> : vector<8x32xf32>
    %37 = tpu.matmul %34, %36, %cst_12 {dimension_numbers = #tpu.dot_dimension_numbers<[1], [0], [0], [1], [0, 0, 1, 1], [], []>} : vector<8x32xbf16>, vector<32x32xbf16>, vector<8x32xf32> -> vector<8x32xf32>
    %c0_13 = arith.constant 0 : index
    %c0_14 = arith.constant 0 : index
    %c0_15 = arith.constant 0 : index
    %38 = vector.load %arg4[%c0_13, %c0_14, %c0_15] : memref<1x32x32xbf16, #tpu.memory_space<vmem>>, vector<1x32x32xbf16>
    %39 = vector.shape_cast %38 : vector<1x32x32xbf16> to vector<32x32xbf16>
    %cst_16 = arith.constant dense<0.000000e+00> : vector<8x32xf32>
    %40 = tpu.matmul %34, %39, %cst_16 {dimension_numbers = #tpu.dot_dimension_numbers<[1], [0], [0], [1], [0, 0, 1, 1], [], []>} : vector<8x32xbf16>, vector<32x32xbf16>, vector<8x32xf32> -> vector<8x32xf32>
    %c0_17 = arith.constant 0 : index
    %c0_18 = arith.constant 0 : index
    %c0_19 = arith.constant 0 : index
    %41 = vector.load %arg5[%c0_17, %c0_18, %c0_19] : memref<1x32x32xbf16, #tpu.memory_space<vmem>>, vector<1x32x32xbf16>
    %42 = vector.shape_cast %41 : vector<1x32x32xbf16> to vector<32x32xbf16>
    %cst_20 = arith.constant dense<0.000000e+00> : vector<8x32xf32>
    %43 = tpu.matmul %34, %42, %cst_20 {dimension_numbers = #tpu.dot_dimension_numbers<[1], [0], [0], [1], [0, 0, 1, 1], [], []>} : vector<8x32xbf16>, vector<32x32xbf16>, vector<8x32xf32> -> vector<8x32xf32>
    %c0_21 = arith.constant 0 : index
    %c0_22 = arith.constant 0 : index
    %44 = vector.load %arg11[%c0_21, %c0_22] : memref<8x32xf32, #tpu.memory_space<vmem>>, vector<8x32xf32>
    %c0_23 = arith.constant 0 : index
    %c0_24 = arith.constant 0 : index
    %45 = vector.load %arg12[%c0_23, %c0_24] : memref<8x32xf32, #tpu.memory_space<vmem>>, vector<8x32xf32>
    %46 = vector.extract_strided_slice %37 {offsets = [0, 16], sizes = [8, 16], strides = [1, 1]} : vector<8x32xf32> to vector<8x16xf32>
    %47 = vector.extract_strided_slice %37 {offsets = [0, 0], sizes = [8, 16], strides = [1, 1]} : vector<8x32xf32> to vector<8x16xf32>
    %48 = tpu.concatenate %46, %47 in 1 : vector<8x16xf32>, vector<8x16xf32> -> vector<8x32xf32>
    %49 = arith.mulf %37, %44 : vector<8x32xf32>
    %50 = arith.mulf %48, %45 : vector<8x32xf32>
    %51 = arith.addf %49, %50 : vector<8x32xf32>
    %52 = vector.extract_strided_slice %40 {offsets = [0, 16], sizes = [8, 16], strides = [1, 1]} : vector<8x32xf32> to vector<8x16xf32>
    %53 = vector.extract_strided_slice %40 {offsets = [0, 0], sizes = [8, 16], strides = [1, 1]} : vector<8x32xf32> to vector<8x16xf32>
    %54 = tpu.concatenate %52, %53 in 1 : vector<8x16xf32>, vector<8x16xf32> -> vector<8x32xf32>
    %55 = arith.mulf %40, %44 : vector<8x32xf32>
    %56 = arith.mulf %54, %45 : vector<8x32xf32>
    %57 = arith.addf %55, %56 : vector<8x32xf32>
    %58 = vector.extract_strided_slice %51 {offsets = [0, 0], sizes = [8, 8], strides = [1, 1]} : vector<8x32xf32> to vector<8x8xf32>
    %59 = vector.extract_strided_slice %51 {offsets = [0, 8], sizes = [8, 8], strides = [1, 1]} : vector<8x32xf32> to vector<8x8xf32>
    %60 = vector.extract_strided_slice %51 {offsets = [0, 16], sizes = [8, 8], strides = [1, 1]} : vector<8x32xf32> to vector<8x8xf32>
    %61 = vector.extract_strided_slice %51 {offsets = [0, 24], sizes = [8, 8], strides = [1, 1]} : vector<8x32xf32> to vector<8x8xf32>
    %62 = vector.shape_cast %58 : vector<8x8xf32> to vector<1x8x8xf32>
    %63 = vector.shape_cast %59 : vector<8x8xf32> to vector<1x8x8xf32>
    %64 = vector.shape_cast %60 : vector<8x8xf32> to vector<1x8x8xf32>
    %65 = vector.shape_cast %61 : vector<8x8xf32> to vector<1x8x8xf32>
    %66 = tpu.concatenate %62, %63, %64, %65 in 0 : vector<1x8x8xf32>, vector<1x8x8xf32>, vector<1x8x8xf32>, vector<1x8x8xf32> -> vector<4x8x8xf32>
    %67 = vector.extract_strided_slice %57 {offsets = [0, 0], sizes = [8, 8], strides = [1, 1]} : vector<8x32xf32> to vector<8x8xf32>
    %68 = vector.extract_strided_slice %57 {offsets = [0, 8], sizes = [8, 8], strides = [1, 1]} : vector<8x32xf32> to vector<8x8xf32>
    %69 = vector.extract_strided_slice %57 {offsets = [0, 16], sizes = [8, 8], strides = [1, 1]} : vector<8x32xf32> to vector<8x8xf32>
    %70 = vector.extract_strided_slice %57 {offsets = [0, 24], sizes = [8, 8], strides = [1, 1]} : vector<8x32xf32> to vector<8x8xf32>
    %71 = vector.shape_cast %67 : vector<8x8xf32> to vector<1x8x8xf32>
    %72 = vector.shape_cast %68 : vector<8x8xf32> to vector<1x8x8xf32>
    %73 = vector.shape_cast %69 : vector<8x8xf32> to vector<1x8x8xf32>
    %74 = vector.shape_cast %70 : vector<8x8xf32> to vector<1x8x8xf32>
    %75 = tpu.concatenate %71, %72, %73, %74 in 0 : vector<1x8x8xf32>, vector<1x8x8xf32>, vector<1x8x8xf32>, vector<1x8x8xf32> -> vector<4x8x8xf32>
    %76 = vector.extract_strided_slice %43 {offsets = [0, 0], sizes = [8, 8], strides = [1, 1]} : vector<8x32xf32> to vector<8x8xf32>
    %77 = vector.extract_strided_slice %43 {offsets = [0, 8], sizes = [8, 8], strides = [1, 1]} : vector<8x32xf32> to vector<8x8xf32>
    %78 = vector.extract_strided_slice %43 {offsets = [0, 16], sizes = [8, 8], strides = [1, 1]} : vector<8x32xf32> to vector<8x8xf32>
    %79 = vector.extract_strided_slice %43 {offsets = [0, 24], sizes = [8, 8], strides = [1, 1]} : vector<8x32xf32> to vector<8x8xf32>
    %80 = vector.shape_cast %76 : vector<8x8xf32> to vector<1x8x8xf32>
    %81 = vector.shape_cast %77 : vector<8x8xf32> to vector<1x8x8xf32>
    %82 = vector.shape_cast %78 : vector<8x8xf32> to vector<1x8x8xf32>
    %83 = vector.shape_cast %79 : vector<8x8xf32> to vector<1x8x8xf32>
    %84 = tpu.concatenate %80, %81, %82, %83 in 0 : vector<1x8x8xf32>, vector<1x8x8xf32>, vector<1x8x8xf32>, vector<1x8x8xf32> -> vector<4x8x8xf32>
    %85 = arith.truncf %84 : vector<4x8x8xf32> to vector<4x8x8xbf16>
    %cst_25 = arith.constant 0.000000e+00 : f32
    %86 = vector.broadcast %cst_25 : f32 to vector<4x8x8xf32>
    %87 = arith.cmpf ogt, %75, %86 : vector<4x8x8xf32>
    %cst_26 = arith.constant 1.000000e+00 : f32
    %88 = vector.broadcast %cst_26 : f32 to vector<4x8x8xf32>
    %89 = arith.addf %75, %88 : vector<4x8x8xf32>
    %cst_27 = arith.constant 0.000000e+00 : f32
    %90 = vector.broadcast %cst_27 : f32 to vector<4x8x8xf32>
    %91 = arith.minimumf %75, %90 : vector<4x8x8xf32>
    %92 = math.exp %91 : vector<4x8x8xf32>
    %93 = arith.select %87, %89, %92 : vector<4x8x8xi1>, vector<4x8x8xf32>
    %cst_28 = arith.constant 0.000000e+00 : f32
    %94 = vector.broadcast %cst_28 : f32 to vector<4x8x8xf32>
    %95 = arith.cmpf ogt, %66, %94 : vector<4x8x8xf32>
    %cst_29 = arith.constant 1.000000e+00 : f32
    %96 = vector.broadcast %cst_29 : f32 to vector<4x8x8xf32>
    %97 = arith.addf %66, %96 : vector<4x8x8xf32>
    %cst_30 = arith.constant 0.000000e+00 : f32
    %98 = vector.broadcast %cst_30 : f32 to vector<4x8x8xf32>
    %99 = arith.minimumf %66, %98 : vector<4x8x8xf32>
    %100 = math.exp %99 : vector<4x8x8xf32>
    %101 = arith.select %95, %97, %100 : vector<4x8x8xi1>, vector<4x8x8xf32>
    %102 = arith.truncf %93 : vector<4x8x8xf32> to vector<4x8x8xbf16>
    "tpu.trace_start"() <{level = 10 : i32, message = "hsd,hse->hde"}> : () -> ()
    %cst_31 = arith.constant dense<0.000000e+00> : vector<4x8x8xf32>
    %103 = tpu.matmul %102, %85, %cst_31 {dimension_numbers = #tpu.dot_dimension_numbers<[1], [1], [2], [2], [0, 0, 0, 2, 1, 2], [0], [0]>} : vector<4x8x8xbf16>, vector<4x8x8xbf16>, vector<4x8x8xf32> -> vector<4x8x8xf32>
    "tpu.trace_stop"() : () -> ()
    %cst_32 = arith.constant dense<0.000000e+00> : vector<4x8xf32>
    %104 = vector.multi_reduction <add>, %93, %cst_32 [1] : vector<4x8x8xf32> to vector<4x8xf32>
    %105 = arith.truncf %101 : vector<4x8x8xf32> to vector<4x8x8xbf16>
    %106 = arith.truncf %103 : vector<4x8x8xf32> to vector<4x8x8xbf16>
    "tpu.trace_start"() <{level = 10 : i32, message = "hsd,hde->hse"}> : () -> ()
    %cst_33 = arith.constant dense<0.000000e+00> : vector<4x8x8xf32>
    %107 = tpu.matmul %105, %106, %cst_33 {dimension_numbers = #tpu.dot_dimension_numbers<[2], [1], [1], [2], [0, 0, 0, 1, 1, 2], [0], [0]>} : vector<4x8x8xbf16>, vector<4x8x8xbf16>, vector<4x8x8xf32> -> vector<4x8x8xf32>
    "tpu.trace_stop"() : () -> ()
    %108 = vector.shape_cast %104 : vector<4x8xf32> to vector<4x1x8xf32>
    %109 = vector.broadcast %108 : vector<4x1x8xf32> to vector<4x8x8xf32>
    %110 = arith.mulf %101, %109 : vector<4x8x8xf32>
    %cst_34 = arith.constant dense<0.000000e+00> : vector<4x8xf32>
    %111 = vector.multi_reduction <add>, %110, %cst_34 [2] : vector<4x8x8xf32> to vector<4x8xf32>
    %112 = vector.shape_cast %111 : vector<4x8xf32> to vector<4x8x1xf32>
    %113 = vector.broadcast %112 : vector<4x8x1xf32> to vector<4x8x8xf32>
    %114 = arith.divf %107, %113 : vector<4x8x8xf32>
    %cst_35 = arith.constant 0.353553385 : f32
    %115 = vector.broadcast %cst_35 : f32 to vector<4x8x8xf32>
    %116 = arith.mulf %66, %115 : vector<4x8x8xf32>
    %117 = arith.truncf %116 : vector<4x8x8xf32> to vector<4x8x8xbf16>
    %118 = arith.truncf %75 : vector<4x8x8xf32> to vector<4x8x8xbf16>
    "tpu.trace_start"() <{level = 10 : i32, message = "hqd,hkd->hqk"}> : () -> ()
    %cst_36 = arith.constant dense<0.000000e+00> : vector<4x8x8xf32>
    %119 = tpu.matmul %117, %118, %cst_36 {dimension_numbers = #tpu.dot_dimension_numbers<[2], [2], [1], [1], [0, 0, 0, 1, 1, 1], [0], [0]>} : vector<4x8x8xbf16>, vector<4x8x8xbf16>, vector<4x8x8xf32> -> vector<4x8x8xf32>
    "tpu.trace_stop"() : () -> ()
    %cst_37 = arith.constant dense<0xFF800000> : vector<4x8xf32>
    %120 = vector.multi_reduction <maximumf>, %119, %cst_37 [2] : vector<4x8x8xf32> to vector<4x8xf32>
    %121 = vector.shape_cast %120 : vector<4x8xf32> to vector<4x8x1xf32>
    %122 = vector.broadcast %121 : vector<4x8x1xf32> to vector<4x8x8xf32>
    %123 = arith.subf %119, %122 : vector<4x8x8xf32>
    %124 = math.exp %123 : vector<4x8x8xf32>
    %cst_38 = arith.constant dense<0.000000e+00> : vector<4x8xf32>
    %125 = vector.multi_reduction <add>, %124, %cst_38 [2] : vector<4x8x8xf32> to vector<4x8xf32>
    %126 = vector.shape_cast %125 : vector<4x8xf32> to vector<4x8x1xf32>
    %127 = vector.broadcast %126 : vector<4x8x1xf32> to vector<4x8x8xf32>
    %128 = arith.divf %124, %127 : vector<4x8x8xf32>
    %129 = arith.truncf %128 : vector<4x8x8xf32> to vector<4x8x8xbf16>
    "tpu.trace_start"() <{level = 10 : i32, message = "hqk,hkd->hqd"}> : () -> ()
    %cst_39 = arith.constant dense<0.000000e+00> : vector<4x8x8xf32>
    %130 = tpu.matmul %129, %85, %cst_39 {dimension_numbers = #tpu.dot_dimension_numbers<[2], [1], [1], [2], [0, 0, 0, 1, 1, 2], [0], [0]>} : vector<4x8x8xbf16>, vector<4x8x8xbf16>, vector<4x8x8xf32> -> vector<4x8x8xf32>
    "tpu.trace_stop"() : () -> ()
    %131 = vector.extract_strided_slice %114 {offsets = [0, 0, 0], sizes = [1, 8, 8], strides = [1, 1, 1]} : vector<4x8x8xf32> to vector<1x8x8xf32>
    %132 = vector.shape_cast %131 : vector<1x8x8xf32> to vector<8x8xf32>
    %133 = vector.extract_strided_slice %114 {offsets = [1, 0, 0], sizes = [1, 8, 8], strides = [1, 1, 1]} : vector<4x8x8xf32> to vector<1x8x8xf32>
    %134 = vector.shape_cast %133 : vector<1x8x8xf32> to vector<8x8xf32>
    %135 = vector.extract_strided_slice %114 {offsets = [2, 0, 0], sizes = [1, 8, 8], strides = [1, 1, 1]} : vector<4x8x8xf32> to vector<1x8x8xf32>
    %136 = vector.shape_cast %135 : vector<1x8x8xf32> to vector<8x8xf32>
    %137 = vector.extract_strided_slice %114 {offsets = [3, 0, 0], sizes = [1, 8, 8], strides = [1, 1, 1]} : vector<4x8x8xf32> to vector<1x8x8xf32>
    %138 = vector.shape_cast %137 : vector<1x8x8xf32> to vector<8x8xf32>
    %139 = tpu.concatenate %132, %134, %136, %138 in 1 : vector<8x8xf32>, vector<8x8xf32>, vector<8x8xf32>, vector<8x8xf32> -> vector<8x32xf32>
    %140 = vector.extract_strided_slice %130 {offsets = [0, 0, 0], sizes = [1, 8, 8], strides = [1, 1, 1]} : vector<4x8x8xf32> to vector<1x8x8xf32>
    %141 = vector.shape_cast %140 : vector<1x8x8xf32> to vector<8x8xf32>
    %142 = vector.extract_strided_slice %130 {offsets = [1, 0, 0], sizes = [1, 8, 8], strides = [1, 1, 1]} : vector<4x8x8xf32> to vector<1x8x8xf32>
    %143 = vector.shape_cast %142 : vector<1x8x8xf32> to vector<8x8xf32>
    %144 = vector.extract_strided_slice %130 {offsets = [2, 0, 0], sizes = [1, 8, 8], strides = [1, 1, 1]} : vector<4x8x8xf32> to vector<1x8x8xf32>
    %145 = vector.shape_cast %144 : vector<1x8x8xf32> to vector<8x8xf32>
    %146 = vector.extract_strided_slice %130 {offsets = [3, 0, 0], sizes = [1, 8, 8], strides = [1, 1, 1]} : vector<4x8x8xf32> to vector<1x8x8xf32>
    %147 = vector.shape_cast %146 : vector<1x8x8xf32> to vector<8x8xf32>
    %148 = tpu.concatenate %141, %143, %145, %147 in 1 : vector<8x8xf32>, vector<8x8xf32>, vector<8x8xf32>, vector<8x8xf32> -> vector<8x32xf32>
    %149 = vector.broadcast %11 : vector<1x32xf32> to vector<8x32xf32>
    %150 = arith.mulf %149, %139 : vector<8x32xf32>
    %cst_40 = arith.constant 1.000000e+00 : f32
    %151 = vector.broadcast %cst_40 : f32 to vector<1x32xf32>
    %152 = arith.subf %151, %11 : vector<1x32xf32>
    %153 = vector.broadcast %152 : vector<1x32xf32> to vector<8x32xf32>
    %154 = arith.mulf %153, %148 : vector<8x32xf32>
    %155 = arith.addf %150, %154 : vector<8x32xf32>
    %156 = arith.truncf %155 : vector<8x32xf32> to vector<8x32xbf16>
    %c0_41 = arith.constant 0 : index
    %c0_42 = arith.constant 0 : index
    %c0_43 = arith.constant 0 : index
    %157 = vector.load %arg6[%c0_41, %c0_42, %c0_43] : memref<1x32x32xbf16, #tpu.memory_space<vmem>>, vector<1x32x32xbf16>
    %158 = vector.shape_cast %157 : vector<1x32x32xbf16> to vector<32x32xbf16>
    %cst_44 = arith.constant dense<0.000000e+00> : vector<8x32xf32>
    %159 = tpu.matmul %156, %158, %cst_44 {dimension_numbers = #tpu.dot_dimension_numbers<[1], [0], [0], [1], [0, 0, 1, 1], [], []>} : vector<8x32xbf16>, vector<32x32xbf16>, vector<8x32xf32> -> vector<8x32xf32>
    %160 = arith.addf %3, %159 : vector<8x32xf32>
    %cst_45 = arith.constant dense<0.000000e+00> : vector<8xf32>
    %161 = vector.multi_reduction <add>, %160, %cst_45 [1] : vector<8x32xf32> to vector<8xf32>
    %162 = vector.shape_cast %161 : vector<8xf32> to vector<8x1xf32>
    %cst_46 = arith.constant 3.200000e+01 : f32
    %163 = vector.broadcast %cst_46 : f32 to vector<8x1xf32>
    %164 = arith.divf %162, %163 : vector<8x1xf32>
    %165 = vector.broadcast %164 : vector<8x1xf32> to vector<8x32xf32>
    %166 = arith.subf %160, %165 : vector<8x32xf32>
    %167 = arith.mulf %166, %166 : vector<8x32xf32>
    %cst_47 = arith.constant dense<0.000000e+00> : vector<8xf32>
    %168 = vector.multi_reduction <add>, %167, %cst_47 [1] : vector<8x32xf32> to vector<8xf32>
    %169 = vector.shape_cast %168 : vector<8xf32> to vector<8x1xf32>
    %cst_48 = arith.constant 3.200000e+01 : f32
    %170 = vector.broadcast %cst_48 : f32 to vector<8x1xf32>
    %171 = arith.divf %169, %170 : vector<8x1xf32>
    %172 = vector.broadcast %164 : vector<8x1xf32> to vector<8x32xf32>
    %173 = arith.subf %160, %172 : vector<8x32xf32>
    %cst_49 = arith.constant 9.99999974E-6 : f32
    %174 = vector.broadcast %cst_49 : f32 to vector<8x1xf32>
    %175 = arith.addf %171, %174 : vector<8x1xf32>
    %176 = math.rsqrt %175 : vector<8x1xf32>
    %177 = vector.broadcast %176 : vector<8x1xf32> to vector<8x32xf32>
    %178 = arith.mulf %173, %177 : vector<8x32xf32>
    %179 = vector.broadcast %8 : vector<1x32xf32> to vector<8x32xf32>
    %180 = arith.mulf %178, %179 : vector<8x32xf32>
    %181 = vector.broadcast %9 : vector<1x32xf32> to vector<8x32xf32>
    %182 = arith.addf %180, %181 : vector<8x32xf32>
    %183 = arith.truncf %182 : vector<8x32xf32> to vector<8x32xbf16>
    %c0_50 = arith.constant 0 : index
    %c0_51 = arith.constant 0 : index
    %c0_52 = arith.constant 0 : index
    %184 = vector.load %arg7[%c0_50, %c0_51, %c0_52] : memref<1x32x64xbf16, #tpu.memory_space<vmem>>, vector<1x32x64xbf16>
    %185 = vector.shape_cast %184 : vector<1x32x64xbf16> to vector<32x64xbf16>
    %cst_53 = arith.constant dense<0.000000e+00> : vector<8x64xf32>
    %186 = tpu.matmul %183, %185, %cst_53 {dimension_numbers = #tpu.dot_dimension_numbers<[1], [0], [0], [1], [0, 0, 1, 1], [], []>} : vector<8x32xbf16>, vector<32x64xbf16>, vector<8x64xf32> -> vector<8x64xf32>
    %c0_54 = arith.constant 0 : index
    %c0_55 = arith.constant 0 : index
    %c0_56 = arith.constant 0 : index
    %187 = vector.load %arg10[%c0_54, %c0_55, %c0_56] : memref<1x1x64xf32, #tpu.memory_space<vmem>>, vector<1x1x64xf32>
    %188 = vector.shape_cast %187 : vector<1x1x64xf32> to vector<1x64xf32>
    %189 = vector.broadcast %188 : vector<1x64xf32> to vector<8x64xf32>
    %190 = arith.addf %186, %189 : vector<8x64xf32>
    %cst_57 = arith.constant 2.000000e+01 : f32
    %191 = vector.broadcast %cst_57 : f32 to vector<8x64xf32>
    %192 = arith.cmpf ogt, %190, %191 : vector<8x64xf32>
    %cst_58 = arith.constant 2.000000e+01 : f32
    %193 = vector.broadcast %cst_58 : f32 to vector<8x64xf32>
    %194 = arith.minimumf %190, %193 : vector<8x64xf32>
    %195 = math.exp %194 : vector<8x64xf32>
    %cst_59 = arith.constant 1.000000e+00 : f32
    %196 = vector.broadcast %cst_59 : f32 to vector<8x64xf32>
    %197 = arith.addf %196, %195 : vector<8x64xf32>
    %198 = math.log %197 : vector<8x64xf32>
    %199 = arith.select %192, %190, %198 : vector<8x64xi1>, vector<8x64xf32>
    %200 = math.tanh %199 : vector<8x64xf32>
    %201 = arith.mulf %190, %200 : vector<8x64xf32>
    %202 = arith.truncf %201 : vector<8x64xf32> to vector<8x64xbf16>
    %c0_60 = arith.constant 0 : index
    %c0_61 = arith.constant 0 : index
    %c0_62 = arith.constant 0 : index
    %203 = vector.load %arg8[%c0_60, %c0_61, %c0_62] : memref<1x64x32xbf16, #tpu.memory_space<vmem>>, vector<1x64x32xbf16>
    %204 = vector.shape_cast %203 : vector<1x64x32xbf16> to vector<64x32xbf16>
    %cst_63 = arith.constant dense<0.000000e+00> : vector<8x32xf32>
    %205 = tpu.matmul %202, %204, %cst_63 {dimension_numbers = #tpu.dot_dimension_numbers<[1], [0], [0], [1], [0, 0, 1, 1], [], []>} : vector<8x64xbf16>, vector<64x32xbf16>, vector<8x32xf32> -> vector<8x32xf32>
    %206 = vector.broadcast %10 : vector<1x32xf32> to vector<8x32xf32>
    %207 = arith.addf %205, %206 : vector<8x32xf32>
    %208 = arith.addf %160, %207 : vector<8x32xf32>
    %c0_64 = arith.constant 0 : index
    %c0_65 = arith.constant 0 : index
    %209 = vector.load %arg14[%c0_64, %c0_65] : memref<8x32xf32, #tpu.memory_space<vmem>>, vector<8x32xf32>
    tpu.vector_store %arg14[%c0_64, %c0_65], %208 {strides = array<i32>} : memref<8x32xf32, #tpu.memory_space<vmem>>, vector<8x32xf32>,
    %c1_i32 = arith.constant 1 : i32
    %210 = arith.cmpi eq, %arg1, %c1_i32 : i32
    %211 = arith.extui %210 : i1 to i32
    %c0_i32_66 = arith.constant 0 : i32
    %212 = arith.cmpi ne, %211, %c0_i32_66 : i32
    scf.if %212 {
      %213 = arith.truncf %208 : vector<8x32xf32> to vector<8x32xbf16>
      %c0_67 = arith.constant 0 : index
      %c0_68 = arith.constant 0 : index
      %214 = vector.load %arg13[%c0_67, %c0_68] : memref<8x32xbf16, #tpu.memory_space<vmem>>, vector<8x32xbf16>
      tpu.vector_store %arg13[%c0_67, %c0_68], %213 {strides = array<i32>} : memref<8x32xbf16, #tpu.memory_space<vmem>>, vector<8x32xbf16>,
    } else {
    }
    return
  }
  func.func @transform_0(%arg0: i32, %arg1: i32) -> (i32, i32) {
    %c0_i32 = arith.constant 0 : i32
    %c0_i32_0 = arith.constant 0 : i32
    return %arg0, %c0_i32 : i32, i32
  }
  func.func @transform_1(%arg0: i32, %arg1: i32) -> (i32, i32, i32) {
    %c0_i32 = arith.constant 0 : i32
    %c0_i32_0 = arith.constant 0 : i32
    %c0_i32_1 = arith.constant 0 : i32
    return %arg1, %c0_i32, %c0_i32_0 : i32, i32, i32
  }
  func.func @transform_2(%arg0: i32, %arg1: i32) -> (i32, i32, i32) {
    %c0_i32 = arith.constant 0 : i32
    %c0_i32_0 = arith.constant 0 : i32
    %c0_i32_1 = arith.constant 0 : i32
    return %arg1, %c0_i32, %c0_i32_0 : i32, i32, i32
  }
  func.func @transform_3(%arg0: i32, %arg1: i32) -> (i32, i32, i32) {
    %c0_i32 = arith.constant 0 : i32
    %c0_i32_0 = arith.constant 0 : i32
    %c0_i32_1 = arith.constant 0 : i32
    return %arg1, %c0_i32, %c0_i32_0 : i32, i32, i32
  }
  func.func @transform_4(%arg0: i32, %arg1: i32) -> (i32, i32, i32) {
    %c0_i32 = arith.constant 0 : i32
    %c0_i32_0 = arith.constant 0 : i32
    %c0_i32_1 = arith.constant 0 : i32
    return %arg1, %c0_i32, %c0_i32_0 : i32, i32, i32
  }
  func.func @transform_5(%arg0: i32, %arg1: i32) -> (i32, i32, i32) {
    %c0_i32 = arith.constant 0 : i32
    %c0_i32_0 = arith.constant 0 : i32
    %c0_i32_1 = arith.constant 0 : i32
    return %arg1, %c0_i32, %c0_i32_0 : i32, i32, i32
  }
  func.func @transform_6(%arg0: i32, %arg1: i32) -> (i32, i32, i32) {
    %c0_i32 = arith.constant 0 : i32
    %c0_i32_0 = arith.constant 0 : i32
    %c0_i32_1 = arith.constant 0 : i32
    return %arg1, %c0_i32, %c0_i32_0 : i32, i32, i32
  }
  func.func @transform_7(%arg0: i32, %arg1: i32) -> (i32, i32, i32) {
    %c0_i32 = arith.constant 0 : i32
    %c0_i32_0 = arith.constant 0 : i32
    %c0_i32_1 = arith.constant 0 : i32
    return %arg1, %c0_i32, %c0_i32_0 : i32, i32, i32
  }
  func.func @transform_8(%arg0: i32, %arg1: i32) -> (i32, i32, i32) {
    %c0_i32 = arith.constant 0 : i32
    %c0_i32_0 = arith.constant 0 : i32
    %c0_i32_1 = arith.constant 0 : i32
    return %arg1, %c0_i32, %c0_i32_0 : i32, i32, i32
  }
  func.func @transform_9(%arg0: i32, %arg1: i32) -> (i32, i32) {
    %c0_i32 = arith.constant 0 : i32
    %c0_i32_0 = arith.constant 0 : i32
    %c0_i32_1 = arith.constant 0 : i32
    return %c0_i32, %c0_i32_0 : i32, i32
  }
  func.func @transform_10(%arg0: i32, %arg1: i32) -> (i32, i32) {
    %c0_i32 = arith.constant 0 : i32
    %c0_i32_0 = arith.constant 0 : i32
    %c0_i32_1 = arith.constant 0 : i32
    return %c0_i32, %c0_i32_0 : i32, i32
  }
  func.func @transform_11(%arg0: i32, %arg1: i32) -> (i32, i32) {
    %c0_i32 = arith.constant 0 : i32
    %c0_i32_0 = arith.constant 0 : i32
    return %arg0, %c0_i32 : i32, i32
  }
}

</mosaic_0001>

<llo_original>
// kernel: tpu_custom_call.1
$region0: #{tpu_custom_call.1}
  #allocation0 [shape = 'u32[]', space=smem, size = 0x4, offset = 0x4, fixed_abs, tag = 'smem constant byte address 0x4 - core index']
  #allocation1 [shape = 'u32[72,128]{1,0:T(1,128)}', space=vmem, size = 0x9000, scoped, tag = 'internal scratch']
  #allocation2 [shape = 'f32[8,32]{1,0:T(8,128)}', space=vmem, size = 0x1000, scoped, tag = 'scratch operand']
  %s0 = inlined_call_operand.hbm [shape: f32[16,32], index: 0, kind: input, shape index: {}]
  %s1 = inlined_call_operand.vmem [shape: bf16[2,32,32], index: 1, kind: input, shape index: {}]
  %s2 = inlined_call_operand.vmem [shape: bf16[2,32,32], index: 2, kind: input, shape index: {}]
  %s3 = inlined_call_operand.vmem [shape: bf16[2,32,32], index: 3, kind: input, shape index: {}]
  %s4 = inlined_call_operand.hbm [shape: bf16[2,32,32], index: 4, kind: input, shape index: {}]
  %s5 = inlined_call_operand.hbm [shape: bf16[2,32,64], index: 5, kind: input, shape index: {}]
  %s6 = inlined_call_operand.vmem [shape: bf16[2,64,32], index: 6, kind: input, shape index: {}]
  %s7 = inlined_call_operand.vmem [shape: f32[2,6,32], index: 7, kind: input, shape index: {}]
  %s8 = inlined_call_operand.vmem [shape: f32[2,1,64], index: 8, kind: input, shape index: {}]
  %s9 = inlined_call_operand.hbm [shape: f32[8,32], index: 9, kind: input, shape index: {}]
  %s10 = inlined_call_operand.hbm [shape: f32[8,32], index: 10, kind: input, shape index: {}]
  %s11 = inlined_call_operand.hbm [shape: bf16[16,32], index: 11, kind: output, shape index: {}]
  %s12 = sld [smem:[#allocation0]]
  $region105: #{tpu_custom_call.1} parent=0
    _
  %s14 = ssub.s32 1, %s12
  %s15 = scalar_select 0, %s14, %s12
  $region1: #{tpu_custom_call.1} parent=0
    #allocation3 [shape = 'u8[8192]{0}', space=vmem, size = 0x2000, scoped, tag = 'input window, operand 0']
    #allocation4 [shape = 's32[2]{0}', space=sflag, size = 0x8, scoped, tag = 'scoped memory for tpu_custom_call.1']
    #allocation5 [shape = 's32[2]{0}', space=sflag, size = 0x8, scoped, tag = 'scoped memory for tpu_custom_call.1']
    #allocation6 [shape = 'u8[16384]{0}', space=vmem, size = 0x4000, scoped, tag = 'input window, operand 4']
    #allocation7 [shape = 's32[2]{0}', space=sflag, size = 0x8, scoped, tag = 'scoped memory for tpu_custom_call.1']
    #allocation8 [shape = 'u8[16384]{0}', space=vmem, size = 0x4000, scoped, tag = 'input window, operand 5']
    #allocation9 [shape = 'u8[4096]{0}', space=vmem, size = 0x1000, scoped, tag = 'input window, operand 9, single buffered']
    #allocation10 [shape = 's32[1]{0}', space=sflag, size = 0x4, scoped, tag = 'scoped memory for tpu_custom_call.1']
    #allocation11 [shape = 'u8[4096]{0}', space=vmem, size = 0x1000, scoped, tag = 'input window, operand 10, single buffered']
    #allocation12 [shape = 'u8[4096]{0}', space=vmem, size = 0x1000, scoped, tag = 'output window, operand 0']
    %16 = vsyncpa [#allocation4], 0
    %s17 = scalar_lea.sflag [#allocation4], 1
    %18 = vsyncpa %s17, 0
    %19 = vsyncpa [#allocation7], 0
    %s20 = scalar_lea.sflag [#allocation7], 1
    %21 = vsyncpa %s20, 0
    %22 = vsyncpa [#allocation10], 0
    %23 = vsyncpa [#allocation5], 0
    %s24 = scalar_lea.sflag [#allocation5], 1
    %25 = vsyncpa %s24, 0
    loop: start=0, step=1, limit=6
    $region2: #{tpu_custom_call.1} parent=1 // loop_pre_header
      _
    $region3: #{tpu_custom_call.1} parent=1 // loop_header
      %s27 = sphi 0, %s31
      %p28 = scmp.ge.s32.totalorder %s27, 6
      %s34 = sphi 0, %s46
      %s35 = sphi 0, %s42
      %s36 = sphi 0, %s34
      %s37 = sphi 0, %s35
      %s38 = sphi 0, %s36
      %s39 = sphi 0, %s37
      %s49 = sphi 0, %s51
      %s52 = sphi 0, %s49
      %s53 = sphi 0, %s52
      %s69 = sphi 0, %s53
      %s75 = sphi 0, %s77
      %s78 = sphi 0, %s75
      %s79 = sphi 0, %s78
      %s95 = sphi 0, %s79
      %s101 = sphi 0, %s103
      %s104 = sphi 0, %s101
      %s105 = sphi 0, %s104
      %s121 = sphi 0, %s105
      %s127 = sphi 0, %s129
      %s130 = sphi 0, %s127
      %s131 = sphi 0, %s130
      %s147 = sphi 0, %s131
      %s153 = sphi 0, %s155
      %s156 = sphi 0, %s153
      %s157 = sphi 0, %s156
      %s173 = sphi 0, %s157
      %s179 = sphi 0, %s181
      %s182 = sphi 0, %s179
      %s183 = sphi 0, %s182
      %s199 = sphi 0, %s183
      %s205 = sphi 0, %s207
      %s208 = sphi 0, %s205
      %s209 = sphi 0, %s208
      %s225 = sphi 0, %s209
      %s231 = sphi 0, %s233
      %s234 = sphi 0, %s231
      %s235 = sphi 0, %s234
      %s251 = sphi 0, %s235
      %s257 = sphi 0, %s259
      %s260 = sphi 0, %s257
      %s261 = sphi 0, %s260
      %s277 = sphi 0, %s261
      %s281 = sphi 0, %s281
      %s283 = sphi 0, %s281
      %s284 = sphi 0, %s283
      %s298 = sphi 0, %s284
      %s302 = sphi 0, %s302
      %s304 = sphi 0, %s302
      %s305 = sphi 0, %s304
      %s319 = sphi 0, %s305
      %s325 = sphi 0, %s327
      %s328 = sphi 0, %s325
      %s329 = sphi 0, %s328
      %s345 = sphi 0, %s329
    $region4: #{tpu_custom_call.1} parent=1 // loop_header_branch
      %30 = sbr.rel (%p28) target = $region8
    $region5: #{tpu_custom_call.1} parent=1 // loop_body
      %s32 = ssub.s32 %s27, 1
      %s33 = ssub.s32 %s27, 2
      %s40 = sadd.s32 1, %s35
      %p41 = scmp.ge.s32.totalorder %s40, 2
      %s42 = scalar_select %p41, 0, %s40
      %s43 = sadd.s32 1, %s34
      %s44 = scalar_select %p41, %s43, %s34
      %p45 = scmp.ge.s32.totalorder %s44, 2
      %s46 = scalar_select %p45, 0, %s44
      %s47 = ssub.s32 %s34, %s46
      %p48 = scmp.eq.s32.totalorder %s47, 0
      %s50 = sadd.s32 %s49, 1
      %s51 = scalar_select %p48, %s49, %s50
      %p54 = pneg %p48
      %p55 = scmp.eq.s32.totalorder %s27, 3
      %p56 = por %p54, %p55
      %p57 = scmp.ne.s32.totalorder %s49, %s52
      %p58 = scmp.eq.s32.totalorder %s27, 0
      %p59 = por %p57, %p58
      %p60 = scmp.ne.s32.totalorder %s49, %s52
      %p61 = scmp.eq.s32.totalorder %s32, 3
      %p62 = por %p60, %p61
      %p63 = scmp.ne.s32.totalorder %s52, %s53
      %p64 = scmp.eq.s32.totalorder %s32, 0
      %p65 = por %p63, %p64
      %p66 = scmp.ne.s32.totalorder %s52, %s53
      %p67 = scmp.eq.s32.totalorder %s33, 3
      %p68 = por %p66, %p67
      %p70 = scmp.ne.s32.totalorder %s53, %s69
      %p71 = scmp.eq.s32.totalorder %s33, 0
      %p72 = por %p70, %p71
      %s73 = ssub.s32 %s35, %s42
      %p74 = scmp.eq.s32.totalorder %s73, 0
      %s76 = sadd.s32 %s75, 1
      %s77 = scalar_select %p74, %s75, %s76
      %p80 = pneg %p74
      %p81 = scmp.eq.s32.totalorder %s27, 3
      %p82 = por %p80, %p81
      %p83 = scmp.ne.s32.totalorder %s75, %s78
      %p84 = scmp.eq.s32.totalorder %s27, 0
      %p85 = por %p83, %p84
      %p86 = scmp.ne.s32.totalorder %s75, %s78
      %p87 = scmp.eq.s32.totalorder %s32, 3
      %p88 = por %p86, %p87
      %p89 = scmp.ne.s32.totalorder %s78, %s79
      %p90 = scmp.eq.s32.totalorder %s32, 0
      %p91 = por %p89, %p90
      %p92 = scmp.ne.s32.totalorder %s78, %s79
      %p93 = scmp.eq.s32.totalorder %s33, 3
      %p94 = por %p92, %p93
      %p96 = scmp.ne.s32.totalorder %s79, %s95
      %p97 = scmp.eq.s32.totalorder %s33, 0
      %p98 = por %p96, %p97
      %s99 = ssub.s32 %s35, %s42
      %p100 = scmp.eq.s32.totalorder %s99, 0
      %s102 = sadd.s32 %s101, 1
      %s103 = scalar_select %p100, %s101, %s102
      %p106 = pneg %p100
      %p107 = scmp.eq.s32.totalorder %s27, 3
      %p108 = por %p106, %p107
      %p109 = scmp.ne.s32.totalorder %s101, %s104
      %p110 = scmp.eq.s32.totalorder %s27, 0
      %p111 = por %p109, %p110
      %p112 = scmp.ne.s32.totalorder %s101, %s104
      %p113 = scmp.eq.s32.totalorder %s32, 3
      %p114 = por %p112, %p113
      %p115 = scmp.ne.s32.totalorder %s104, %s105
      %p116 = scmp.eq.s32.totalorder %s32, 0
      %p117 = por %p115, %p116
      %p118 = scmp.ne.s32.totalorder %s104, %s105
      %p119 = scmp.eq.s32.totalorder %s33, 3
      %p120 = por %p118, %p119
      %p122 = scmp.ne.s32.totalorder %s105, %s121
      %p123 = scmp.eq.s32.totalorder %s33, 0
      %p124 = por %p122, %p123
      %s125 = ssub.s32 %s35, %s42
      %p126 = scmp.eq.s32.totalorder %s125, 0
      %s128 = sadd.s32 %s127, 1
      %s129 = scalar_select %p126, %s127, %s128
      %p132 = pneg %p126
      %p133 = scmp.eq.s32.totalorder %s27, 3
      %p134 = por %p132, %p133
      %p135 = scmp.ne.s32.totalorder %s127, %s130
      %p136 = scmp.eq.s32.totalorder %s27, 0
      %p137 = por %p135, %p136
      %p138 = scmp.ne.s32.totalorder %s127, %s130
      %p139 = scmp.eq.s32.totalorder %s32, 3
      %p140 = por %p138, %p139
      %p141 = scmp.ne.s32.totalorder %s130, %s131
      %p142 = scmp.eq.s32.totalorder %s32, 0
      %p143 = por %p141, %p142
      %p144 = scmp.ne.s32.totalorder %s130, %s131
      %p145 = scmp.eq.s32.totalorder %s33, 3
      %p146 = por %p144, %p145
      %p148 = scmp.ne.s32.totalorder %s131, %s147
      %p149 = scmp.eq.s32.totalorder %s33, 0
      %p150 = por %p148, %p149
      %s151 = ssub.s32 %s35, %s42
      %p152 = scmp.eq.s32.totalorder %s151, 0
      %s154 = sadd.s32 %s153, 1
      %s155 = scalar_select %p152, %s153, %s154
      %p158 = pneg %p152
      %p159 = scmp.eq.s32.totalorder %s27, 3
      %p160 = por %p158, %p159
      %p161 = scmp.ne.s32.totalorder %s153, %s156
      %p162 = scmp.eq.s32.totalorder %s27, 0
      %p163 = por %p161, %p162
      %p164 = scmp.ne.s32.totalorder %s153, %s156
      %p165 = scmp.eq.s32.totalorder %s32, 3
      %p166 = por %p164, %p165
      %p167 = scmp.ne.s32.totalorder %s156, %s157
      %p168 = scmp.eq.s32.totalorder %s32, 0
      %p169 = por %p167, %p168
      %p170 = scmp.ne.s32.totalorder %s156, %s157
      %p171 = scmp.eq.s32.totalorder %s33, 3
      %p172 = por %p170, %p171
      %p174 = scmp.ne.s32.totalorder %s157, %s173
      %p175 = scmp.eq.s32.totalorder %s33, 0
      %p176 = por %p174, %p175
      %s177 = ssub.s32 %s35, %s42
      %p178 = scmp.eq.s32.totalorder %s177, 0
      %s180 = sadd.s32 %s179, 1
      %s181 = scalar_select %p178, %s179, %s180
      %p184 = pneg %p178
      %p185 = scmp.eq.s32.totalorder %s27, 3
      %p186 = por %p184, %p185
      %p187 = scmp.ne.s32.totalorder %s179, %s182
      %p188 = scmp.eq.s32.totalorder %s27, 0
      %p189 = por %p187, %p188
      %p190 = scmp.ne.s32.totalorder %s179, %s182
      %p191 = scmp.eq.s32.totalorder %s32, 3
      %p192 = por %p190, %p191
      %p193 = scmp.ne.s32.totalorder %s182, %s183
      %p194 = scmp.eq.s32.totalorder %s32, 0
      %p195 = por %p193, %p194
      %p196 = scmp.ne.s32.totalorder %s182, %s183
      %p197 = scmp.eq.s32.totalorder %s33, 3
      %p198 = por %p196, %p197
      %p200 = scmp.ne.s32.totalorder %s183, %s199
      %p201 = scmp.eq.s32.totalorder %s33, 0
      %p202 = por %p200, %p201
      %s203 = ssub.s32 %s35, %s42
      %p204 = scmp.eq.s32.totalorder %s203, 0
      %s206 = sadd.s32 %s205, 1
      %s207 = scalar_select %p204, %s205, %s206
      %p210 = pneg %p204
      %p211 = scmp.eq.s32.totalorder %s27, 3
      %p212 = por %p210, %p211
      %p213 = scmp.ne.s32.totalorder %s205, %s208
      %p214 = scmp.eq.s32.totalorder %s27, 0
      %p215 = por %p213, %p214
      %p216 = scmp.ne.s32.totalorder %s205, %s208
      %p217 = scmp.eq.s32.totalorder %s32, 3
      %p218 = por %p216, %p217
      %p219 = scmp.ne.s32.totalorder %s208, %s209
      %p220 = scmp.eq.s32.totalorder %s32, 0
      %p221 = por %p219, %p220
      %p222 = scmp.ne.s32.totalorder %s208, %s209
      %p223 = scmp.eq.s32.totalorder %s33, 3
      %p224 = por %p222, %p223
      %p226 = scmp.ne.s32.totalorder %s209, %s225
      %p227 = scmp.eq.s32.totalorder %s33, 0
      %p228 = por %p226, %p227
      %s229 = ssub.s32 %s35, %s42
      %p230 = scmp.eq.s32.totalorder %s229, 0
      %s232 = sadd.s32 %s231, 1
      %s233 = scalar_select %p230, %s231, %s232
      %p236 = pneg %p230
      %p237 = scmp.eq.s32.totalorder %s27, 3
      %p238 = por %p236, %p237
      %p239 = scmp.ne.s32.totalorder %s231, %s234
      %p240 = scmp.eq.s32.totalorder %s27, 0
      %p241 = por %p239, %p240
      %p242 = scmp.ne.s32.totalorder %s231, %s234
      %p243 = scmp.eq.s32.totalorder %s32, 3
      %p244 = por %p242, %p243
      %p245 = scmp.ne.s32.totalorder %s234, %s235
      %p246 = scmp.eq.s32.totalorder %s32, 0
      %p247 = por %p245, %p246
      %p248 = scmp.ne.s32.totalorder %s234, %s235
      %p249 = scmp.eq.s32.totalorder %s33, 3
      %p250 = por %p248, %p249
      %p252 = scmp.ne.s32.totalorder %s235, %s251
      %p253 = scmp.eq.s32.totalorder %s33, 0
      %p254 = por %p252, %p253
      %s255 = ssub.s32 %s35, %s42
      %p256 = scmp.eq.s32.totalorder %s255, 0
      %s258 = sadd.s32 %s257, 1
      %s259 = scalar_select %p256, %s257, %s258
      %p262 = pneg %p256
      %p263 = scmp.eq.s32.totalorder %s27, 3
      %p264 = por %p262, %p263
      %p265 = scmp.ne.s32.totalorder %s257, %s260
      %p266 = scmp.eq.s32.totalorder %s27, 0
      %p267 = por %p265, %p266
      %p268 = scmp.ne.s32.totalorder %s257, %s260
      %p269 = scmp.eq.s32.totalorder %s32, 3
      %p270 = por %p268, %p269
      %p271 = scmp.ne.s32.totalorder %s260, %s261
      %p272 = scmp.eq.s32.totalorder %s32, 0
      %p273 = por %p271, %p272
      %p274 = scmp.ne.s32.totalorder %s260, %s261
      %p275 = scmp.eq.s32.totalorder %s33, 3
      %p276 = por %p274, %p275
      %p278 = scmp.ne.s32.totalorder %s261, %s277
      %p279 = scmp.eq.s32.totalorder %s33, 0
      %p280 = por %p278, %p279
      %s282 = sadd.s32 %s281, 1
      %p285 = scmp.eq.s32.totalorder %s27, 3
      %p286 = scmp.ne.s32.totalorder %s281, %s283
      %p287 = scmp.eq.s32.totalorder %s27, 0
      %p288 = por %p286, %p287
      %p289 = scmp.ne.s32.totalorder %s281, %s283
      %p290 = scmp.eq.s32.totalorder %s32, 3
      %p291 = por %p289, %p290
      %p292 = scmp.ne.s32.totalorder %s283, %s284
      %p293 = scmp.eq.s32.totalorder %s32, 0
      %p294 = por %p292, %p293
      %p295 = scmp.ne.s32.totalorder %s283, %s284
      %p296 = scmp.eq.s32.totalorder %s33, 3
      %p297 = por %p295, %p296
      %p299 = scmp.ne.s32.totalorder %s284, %s298
      %p300 = scmp.eq.s32.totalorder %s33, 0
      %p301 = por %p299, %p300
      %s303 = sadd.s32 %s302, 1
      %p306 = scmp.eq.s32.totalorder %s27, 3
      %p307 = scmp.ne.s32.totalorder %s302, %s304
      %p308 = scmp.eq.s32.totalorder %s27, 0
      %p309 = por %p307, %p308
      %p310 = scmp.ne.s32.totalorder %s302, %s304
      %p311 = scmp.eq.s32.totalorder %s32, 3
      %p312 = por %p310, %p311
      %p313 = scmp.ne.s32.totalorder %s304, %s305
      %p314 = scmp.eq.s32.totalorder %s32, 0
      %p315 = por %p313, %p314
      %p316 = scmp.ne.s32.totalorder %s304, %s305
      %p317 = scmp.eq.s32.totalorder %s33, 3
      %p318 = por %p316, %p317
      %p320 = scmp.ne.s32.totalorder %s305, %s319
      %p321 = scmp.eq.s32.totalorder %s33, 0
      %p322 = por %p320, %p321
      %s323 = ssub.s32 %s34, %s46
      %p324 = scmp.eq.s32.totalorder %s323, 0
      %s326 = sadd.s32 %s325, 1
      %s327 = scalar_select %p324, %s325, %s326
      %p330 = pneg %p324
      %p331 = scmp.eq.s32.totalorder %s27, 3
      %p332 = por %p330, %p331
      %p333 = scmp.ne.s32.totalorder %s325, %s328
      %p334 = scmp.eq.s32.totalorder %s27, 0
      %p335 = por %p333, %p334
      %p336 = scmp.ne.s32.totalorder %s325, %s328
      %p337 = scmp.eq.s32.totalorder %s32, 3
      %p338 = por %p336, %p337
      %p339 = scmp.ne.s32.totalorder %s328, %s329
      %p340 = scmp.eq.s32.totalorder %s32, 0
      %p341 = por %p339, %p340
      %p342 = scmp.ne.s32.totalorder %s328, %s329
      %p343 = scmp.eq.s32.totalorder %s33, 3
      %p344 = por %p342, %p343
      %p346 = scmp.ne.s32.totalorder %s329, %s345
      %p347 = scmp.eq.s32.totalorder %s33, 0
      %p348 = por %p346, %p347
      %p349 = scmp.le.s32.totalorder 1, %s27
      %p350 = scmp.lt.s32.totalorder %s27, 5
      %p351 = pnand %p349, %p350
      %p352 = pneg %p351
      // Predicated region
      $region9: #{tpu_custom_call.1} parent=5 // pred_check
        _
      $region10: #{tpu_custom_call.1} parent=5 // pred_check_branch
        %354 = sbr.rel (%p351) target = $region12
      $region11: #{tpu_custom_call.1} parent=5 // pred_region
        %s355 = ssub.s32 %s27, 1
        // Predicated region
        $region13: #{tpu_custom_call.1} parent=11 // pred_check
          %p356 = pneg %p294
        $region14: #{tpu_custom_call.1} parent=11 // pred_check_branch
          %358 = sbr.rel (%p356) target = $region16
        $region15: #{tpu_custom_call.1} parent=11 // pred_region
          %360 = vsyncadd [#allocation10], 0
          %s362 = sshll.u32 %s9, 4
          %s363 = int_to_ptr.hbm [resolvable:$true] %s362
          %s364 = sshll.u32 [#allocation9], 4
          %s365 = int_to_ptr.vmem [resolvable:$true] %s364
          %367 = dma.hbm_to_vmem [thread:$0]  %s363, 128, %s365, [#allocation10]
        $region16: #{tpu_custom_call.1} parent=11 // pred_fallthru
          _
        // Predicated region
        $region17: #{tpu_custom_call.1} parent=11 // pred_check
          %p368 = pneg %p315
        $region18: #{tpu_custom_call.1} parent=11 // pred_check_branch
          %370 = sbr.rel (%p368) target = $region20
        $region19: #{tpu_custom_call.1} parent=11 // pred_region
          %372 = vsyncadd [#allocation10], 0
          %s374 = sshll.u32 %s10, 4
          %s375 = int_to_ptr.hbm [resolvable:$true] %s374
          %s376 = sshll.u32 [#allocation11], 4
          %s377 = int_to_ptr.vmem [resolvable:$true] %s376
          %379 = dma.hbm_to_vmem [thread:$0]  %s375, 128, %s377, [#allocation10]
        $region20: #{tpu_custom_call.1} parent=11 // pred_fallthru
          _
      $region12: #{tpu_custom_call.1} parent=5 // pred_fallthru
        _
      %p380 = scmp.lt.s32.totalorder %s27, 4
      // Predicated region
      $region21: #{tpu_custom_call.1} parent=5 // pred_check
        %p381 = pneg %p380
      $region22: #{tpu_custom_call.1} parent=5 // pred_check_branch
        %383 = sbr.rel (%p381) target = $region24
      $region23: #{tpu_custom_call.1} parent=5 // pred_region
        // Predicated region
        $region25: #{tpu_custom_call.1} parent=23 // pred_check
          %p384 = pneg %p59
        $region26: #{tpu_custom_call.1} parent=23 // pred_check_branch
          %386 = sbr.rel (%p384) target = $region28
        $region27: #{tpu_custom_call.1} parent=23 // pred_region
          %s387 = sand.u32 %s49, 1
          %s388 = scalar_lea.sflag [#allocation4], %s387
          %s389 = sand.u32 %s49, 1
          %s390 = smul.addr %s389, 8
          %s391 = scalar_lea.vmem [#allocation3], %s390
          %393 = vsyncadd %s388, 0
          %s394 = smul.addr %s34, 8
          %s395 = scalar_lea.hbm %s0, %s394
          %s397 = sshll.u32 %s395, 4
          %s398 = int_to_ptr.hbm [resolvable:$true] %s397
          %s399 = sshll.u32 %s391, 4
          %s400 = int_to_ptr.vmem [resolvable:$true] %s399
          %402 = dma.hbm_to_vmem [thread:$0]  %s398, 128, %s400, %s388
        $region28: #{tpu_custom_call.1} parent=23 // pred_fallthru
          _
        // Predicated region
        $region29: #{tpu_custom_call.1} parent=23 // pred_check
          %p403 = pneg %p85
        $region30: #{tpu_custom_call.1} parent=23 // pred_check_branch
          %405 = sbr.rel (%p403) target = $region32
        $region31: #{tpu_custom_call.1} parent=23 // pred_region
          %p406 = scmp.lt.s32.totalorder %s35, 1
          %s407 = scalar_select %p406, %s35, 1
          %s408 = smul.addr %s407, 4
          %s409 = smul.addr %s408, 4
          %s410 = scalar_lea.vmem %s1, %s409
        $region32: #{tpu_custom_call.1} parent=23 // pred_fallthru
          _
        // Predicated region
        $region33: #{tpu_custom_call.1} parent=23 // pred_check
          %p411 = pneg %p111
        $region34: #{tpu_custom_call.1} parent=23 // pred_check_branch
          %413 = sbr.rel (%p411) target = $region36
        $region35: #{tpu_custom_call.1} parent=23 // pred_region
          %p414 = scmp.lt.s32.totalorder %s35, 1
          %s415 = scalar_select %p414, %s35, 1
          %s416 = smul.addr %s415, 4
          %s417 = smul.addr %s416, 4
          %s418 = scalar_lea.vmem %s2, %s417
        $region36: #{tpu_custom_call.1} parent=23 // pred_fallthru
          _
        // Predicated region
        $region37: #{tpu_custom_call.1} parent=23 // pred_check
          %p419 = pneg %p137
        $region38: #{tpu_custom_call.1} parent=23 // pred_check_branch
          %421 = sbr.rel (%p419) target = $region40
        $region39: #{tpu_custom_call.1} parent=23 // pred_region
          %p422 = scmp.lt.s32.totalorder %s35, 1
          %s423 = scalar_select %p422, %s35, 1
          %s424 = smul.addr %s423, 4
          %s425 = smul.addr %s424, 4
          %s426 = scalar_lea.vmem %s3, %s425
        $region40: #{tpu_custom_call.1} parent=23 // pred_fallthru
          _
        // Predicated region
        $region41: #{tpu_custom_call.1} parent=23 // pred_check
          %p427 = pneg %p163
        $region42: #{tpu_custom_call.1} parent=23 // pred_check_branch
          %429 = sbr.rel (%p427) target = $region44
        $region43: #{tpu_custom_call.1} parent=23 // pred_region
          %s430 = sand.u32 %s27, 1
          %s431 = scalar_lea.sflag [#allocation7], %s430
          %s432 = sand.u32 %s153, 1
          %s433 = smul.addr %s432, 16
          %s434 = scalar_lea.vmem [#allocation6], %s433
          %436 = vsyncadd %s431, 0
          %s437 = smul.addr %s35, 4
          %s438 = smul.addr %s437, 4
          %s439 = scalar_lea.hbm %s4, %s438
          %s440 = sshll.u32 %s439, 4
          %s441 = int_to_ptr.hbm [resolvable:$true] %s440
          %s442 = sshll.u32 %s434, 4
          %s443 = int_to_ptr.vmem [resolvable:$true] %s442
          %448 = dma.hbm_to_vmem [thread:$0]  %s441, 256, %s443, %s431, 64, 64, 4
        $region44: #{tpu_custom_call.1} parent=23 // pred_fallthru
          _
        // Predicated region
        $region45: #{tpu_custom_call.1} parent=23 // pred_check
          %p449 = pneg %p189
        $region46: #{tpu_custom_call.1} parent=23 // pred_check_branch
          %451 = sbr.rel (%p449) target = $region48
        $region47: #{tpu_custom_call.1} parent=23 // pred_region
          %s452 = sand.u32 %s27, 1
          %s453 = scalar_lea.sflag [#allocation7], %s452
          %s454 = sand.u32 %s179, 1
          %s455 = smul.addr %s454, 16
          %s456 = scalar_lea.vmem [#allocation8], %s455
          %458 = vsyncadd %s453, 0
          %s459 = smul.addr %s35, 4
          %s460 = smul.addr %s459, 4
          %s461 = scalar_lea.hbm %s5, %s460
          %s462 = sshll.u32 %s461, 4
          %s463 = int_to_ptr.hbm [resolvable:$true] %s462
          %s464 = sshll.u32 %s456, 4
          %s465 = int_to_ptr.vmem [resolvable:$true] %s464
          %470 = dma.hbm_to_vmem [thread:$0]  %s463, 256, %s465, %s453, 64, 64, 4
        $region48: #{tpu_custom_call.1} parent=23 // pred_fallthru
          _
        // Predicated region
        $region49: #{tpu_custom_call.1} parent=23 // pred_check
          %p471 = pneg %p215
        $region50: #{tpu_custom_call.1} parent=23 // pred_check_branch
          %473 = sbr.rel (%p471) target = $region52
        $region51: #{tpu_custom_call.1} parent=23 // pred_region
          %p474 = scmp.lt.s32.totalorder %s35, 1
          %s475 = scalar_select %p474, %s35, 1
          %s476 = smul.addr %s475, 8
          %s477 = smul.addr %s476, 4
          %s478 = scalar_lea.vmem %s6, %s477
        $region52: #{tpu_custom_call.1} parent=23 // pred_fallthru
          _
        // Predicated region
        $region53: #{tpu_custom_call.1} parent=23 // pred_check
          %p479 = pneg %p241
        $region54: #{tpu_custom_call.1} parent=23 // pred_check_branch
          %481 = sbr.rel (%p479) target = $region56
        $region55: #{tpu_custom_call.1} parent=23 // pred_region
          %p482 = scmp.lt.s32.totalorder %s35, 1
          %s483 = scalar_select %p482, %s35, 1
          %s484 = smul.addr %s483, 8
          %s485 = scalar_lea.vmem %s7, %s484
        $region56: #{tpu_custom_call.1} parent=23 // pred_fallthru
          _
        // Predicated region
        $region57: #{tpu_custom_call.1} parent=23 // pred_check
          %p486 = pneg %p267
        $region58: #{tpu_custom_call.1} parent=23 // pred_check_branch
          %488 = sbr.rel (%p486) target = $region60
        $region59: #{tpu_custom_call.1} parent=23 // pred_region
          %p489 = scmp.lt.s32.totalorder %s35, 1
          %s490 = scalar_select %p489, %s35, 1
          %s491 = scalar_lea.vmem %s8, %s490
        $region60: #{tpu_custom_call.1} parent=23 // pred_fallthru
          _
      $region24: #{tpu_custom_call.1} parent=5 // pred_fallthru
        _
      %p492 = scmp.le.s32.totalorder 1, %s27
      %p493 = scmp.lt.s32.totalorder %s27, 5
      %p494 = pnand %p492, %p493
      %p495 = pneg %p494
      // Predicated region
      $region61: #{tpu_custom_call.1} parent=5 // pred_check
        _
      $region62: #{tpu_custom_call.1} parent=5 // pred_check_branch
        %497 = sbr.rel (%p494) target = $region64
      $region63: #{tpu_custom_call.1} parent=5 // pred_region
        %s498 = ssub.s32 %s27, 1
        %s499 = sand.u32 %s52, 1
        %s500 = scalar_lea.sflag [#allocation4], %s499
        %s501 = sand.u32 %s52, 1
        %s502 = smul.addr %s501, 8
        %s503 = scalar_lea.vmem [#allocation3], %s502
        // Predicated region
        $region65: #{tpu_custom_call.1} parent=63 // pred_check
          %p504 = pneg %p65
        $region66: #{tpu_custom_call.1} parent=63 // pred_check_branch
          %506 = sbr.rel (%p504) target = $region68
        $region67: #{tpu_custom_call.1} parent=63 // pred_region
          %508 = dma.done %s500, 128
        $region68: #{tpu_custom_call.1} parent=63 // pred_fallthru
          _
        %s509 = sand.u32 %s32, 1
        %s510 = scalar_lea.sflag [#allocation7], %s509
        %s511 = sand.u32 %s156, 1
        %s512 = smul.addr %s511, 16
        %s513 = scalar_lea.vmem [#allocation6], %s512
        // Predicated region
        $region69: #{tpu_custom_call.1} parent=63 // pred_check
          %p514 = pneg %p169
        $region70: #{tpu_custom_call.1} parent=63 // pred_check_branch
          %516 = sbr.rel (%p514) target = $region72
        $region71: #{tpu_custom_call.1} parent=63 // pred_region
          %518 = dma.done %s510, 256
        $region72: #{tpu_custom_call.1} parent=63 // pred_fallthru
          _
        %s519 = sand.u32 %s32, 1
        %s520 = scalar_lea.sflag [#allocation7], %s519
        %s521 = sand.u32 %s182, 1
        %s522 = smul.addr %s521, 16
        %s523 = scalar_lea.vmem [#allocation8], %s522
        // Predicated region
        $region73: #{tpu_custom_call.1} parent=63 // pred_check
          %p524 = pneg %p195
        $region74: #{tpu_custom_call.1} parent=63 // pred_check_branch
          %526 = sbr.rel (%p524) target = $region76
        $region75: #{tpu_custom_call.1} parent=63 // pred_region
          %528 = dma.done %s520, 256
        $region76: #{tpu_custom_call.1} parent=63 // pred_fallthru
          _
        // Predicated region
        $region77: #{tpu_custom_call.1} parent=63 // pred_check
          %p529 = pneg %p294
        $region78: #{tpu_custom_call.1} parent=63 // pred_check_branch
          %531 = sbr.rel (%p529) target = $region80
        $region79: #{tpu_custom_call.1} parent=63 // pred_region
          %533 = dma.done [#allocation10], 128
        $region80: #{tpu_custom_call.1} parent=63 // pred_fallthru
          _
        // Predicated region
        $region81: #{tpu_custom_call.1} parent=63 // pred_check
          %p534 = pneg %p315
        $region82: #{tpu_custom_call.1} parent=63 // pred_check_branch
          %536 = sbr.rel (%p534) target = $region84
        $region83: #{tpu_custom_call.1} parent=63 // pred_region
          %538 = dma.done [#allocation10], 128
        $region84: #{tpu_custom_call.1} parent=63 // pred_fallthru
          _
        %s539 = sand.u32 %s52, 1
        %s540 = scalar_lea.sflag [#allocation4], %s539
        %s541 = sand.u32 %s52, 1
        %s542 = smul.addr %s541, 8
        %s543 = scalar_lea.vmem [#allocation3], %s542
        %p544 = pneg %p65
        %p545 = pneg %p62
        %p546 = scmp.lt.s32.totalorder %s37, 1
        %s547 = scalar_select %p546, %s37, 1
        %s548 = smul.addr %s547, 4
        %s549 = smul.addr %s548, 4
        %s550 = scalar_lea.vmem %s1, %s549
        %p551 = pneg %p91
        %p552 = pneg %p88
        %p553 = scmp.lt.s32.totalorder %s37, 1
        %s554 = scalar_select %p553, %s37, 1
        %s555 = smul.addr %s554, 4
        %s556 = smul.addr %s555, 4
        %s557 = scalar_lea.vmem %s2, %s556
        %p558 = pneg %p117
        %p559 = pneg %p114
        %p560 = scmp.lt.s32.totalorder %s37, 1
        %s561 = scalar_select %p560, %s37, 1
        %s562 = smul.addr %s561, 4
        %s563 = smul.addr %s562, 4
        %s564 = scalar_lea.vmem %s3, %s563
        %p565 = pneg %p143
        %p566 = pneg %p140
        %s567 = sand.u32 %s32, 1
        %s568 = scalar_lea.sflag [#allocation7], %s567
        %s569 = sand.u32 %s156, 1
        %s570 = smul.addr %s569, 16
        %s571 = scalar_lea.vmem [#allocation6], %s570
        %p572 = pneg %p169
        %p573 = pneg %p166
        %s574 = sand.u32 %s32, 1
        %s575 = scalar_lea.sflag [#allocation7], %s574
        %s576 = sand.u32 %s182, 1
        %s577 = smul.addr %s576, 16
        %s578 = scalar_lea.vmem [#allocation8], %s577
        %p579 = pneg %p195
        %p580 = pneg %p192
        %p581 = scmp.lt.s32.totalorder %s37, 1
        %s582 = scalar_select %p581, %s37, 1
        %s583 = smul.addr %s582, 8
        %s584 = smul.addr %s583, 4
        %s585 = scalar_lea.vmem %s6, %s584
        %p586 = pneg %p221
        %p587 = pneg %p218
        %p588 = scmp.lt.s32.totalorder %s37, 1
        %s589 = scalar_select %p588, %s37, 1
        %s590 = smul.addr %s589, 8
        %s591 = scalar_lea.vmem %s7, %s590
        %p592 = pneg %p247
        %p593 = pneg %p244
        %p594 = scmp.lt.s32.totalorder %s37, 1
        %s595 = scalar_select %p594, %s37, 1
        %s596 = scalar_lea.vmem %s8, %s595
        %p597 = pneg %p273
        %p598 = pneg %p270
        %p599 = pneg %p294
        %p600 = pneg %p291
        %p601 = pneg %p315
        %p602 = pneg %p312
        %p603 = pneg %p341
        %p604 = pneg %p338
        %s605 = sand.u32 %s328, 1
        %s606 = scalar_lea.sflag [#allocation5], %s605
        %s607 = sand.u32 %s328, 1
        %s608 = smul.addr %s607, 4
        %s609 = scalar_lea.vmem [#allocation12], %s608
        %p610 = scmp.lt.s32.totalorder %s37, 1
        %s611 = scalar_select %p610, %s37, 1
        %s612 = smul.addr %s611, 4
        %s613 = smul.addr %s612, 4
        %s614 = scalar_lea.vmem %s1, %s613
        %p615 = scmp.lt.s32.totalorder %s37, 1
        %s616 = scalar_select %p615, %s37, 1
        %s617 = smul.addr %s616, 4
        %s618 = smul.addr %s617, 4
        %s619 = scalar_lea.vmem %s2, %s618
        %p620 = scmp.lt.s32.totalorder %s37, 1
        %s621 = scalar_select %p620, %s37, 1
        %s622 = smul.addr %s621, 4
        %s623 = smul.addr %s622, 4
        %s624 = scalar_lea.vmem %s3, %s623
        %p625 = scmp.lt.s32.totalorder %s37, 1
        %s626 = scalar_select %p625, %s37, 1
        %s627 = smul.addr %s626, 8
        %s628 = smul.addr %s627, 4
        %s629 = scalar_lea.vmem %s6, %s628
        %p630 = scmp.lt.s32.totalorder %s37, 1
        %s631 = scalar_select %p630, %s37, 1
        %s632 = smul.addr %s631, 8
        %s633 = scalar_lea.vmem %s7, %s632
        %p634 = scmp.lt.s32.totalorder %s37, 1
        %s635 = scalar_select %p634, %s37, 1
        %s636 = scalar_lea.vmem %s8, %s635
        %p638 = scmp.eq.s32.totalorder %s37, 0
        // Predicated region
        $region85: #{tpu_custom_call.1} parent=63 // pred_check
          %p639 = pneg %p638
        $region86: #{tpu_custom_call.1} parent=63 // pred_check_branch
          %641 = sbr.rel (%p639) target = $region88
        $region87: #{tpu_custom_call.1} parent=63 // pred_region
          %v642 = vld [vmem:[%s503] sm:$0xff]
          %vm643 = vcmask 261120
          %644 = vst.msk [vmem:[#allocation2] sm:$0xff] %vm643, %v642
        $region88: #{tpu_custom_call.1} parent=63 // pred_fallthru
          _
        %v645 = vld [vmem:[#allocation2] sm:$0xff]
        %v646 = vld [vmem:[%s633] sm:$0x3f]
        %vm647 = vcmask 261120
        %v648 = vsel %vm647, %v645, 0.0
        %649 = vadd.xlane.f32.xlu0 %v648
        %v650 = vpop.xlane.xlu0 %649
        %v651 = vrcp.pop 32.0
        %v652 = vmul.f32 32.0, %v651
        %v653 = vsub.f32 1.0, %v652
        %v654 = vmul.f32 %v651, %v653
        %v655 = vadd.f32 %v651, %v654
        %vm656 = vweird.f32 %v651
        %v657 = vsel %vm656, %v651, %v655
        %v658 = vmul.f32 %v650, %v657
        %v659 = vsub.f32 %v645, %v658
        %v660 = vmul.f32 %v659, %v659
        %v661 = vsel %vm647, %v660, 0.0
        %662 = vadd.xlane.f32.xlu0 %v661
        %v663 = vpop.xlane.xlu0 %662
        %v664 = vmul.f32 %v663, %v657
        %v665 = vadd.f32 %v664, 1e-05
        %v666 = vrsqrt.pop %v665
        %v667 = vmul.f32 %v666, %v665
        %v668 = vmul.f32 %v667, %v666
        %v669 = vmul.f32 0.5, %v668
        %v670 = vsub.f32 1.5, %v669
        %v671 = vmul.f32 %v666, %v670
        %vm672 = vweird.f32 %v665
        %vm673 = vweird.f32 %v666
        %vm674 = vmor %vm672, %vm673
        %v675 = vsel %vm674, %v666, %v671
        %v676 = vmul.f32 %v659, %v675
        %v677 = vperm.slane %v646, 0
        %v678 = vmul.f32 %v676, %v677
        %v679 = vperm.slane %v646, 1
        %v680 = vadd.f32 %v678, %v679
        %v681 = vpack.c.bf16 %v680, %v680
        %v682 = vld [vmem:[%s614] sm:$0xf]
        %v683 = vld [vmem:[%s614 + $0x4] sm:$0xf]
        %v684 = vld [vmem:[%s614 + $0x8] sm:$0xf]
        %v685 = vld [vmem:[%s614 + $0xc] sm:$0xf]
        %v690 = vunpack.c.l.b16 %v682
        %v691 = vunpack.c.l.b16 %v683
        %v692 = vunpack.c.l.b16 %v684
        %v693 = vunpack.c.l.b16 %v685
        %v694 = vpack.c.b16 %v691, %v690
        %v695 = vpack.c.b16 %v693, %v692
        %v699 = vsel %vm647, %v681, 0
        %701 = vmatpush.bf16.msra.mxu0 0
        %702 = vmatpush.bf16.msra.mxu0 0
        %703 = vmatpush.bf16.msra.mxu0 0
        %704 = vmatpush.bf16.msra.mxu0 0
        %705 = vmatpush.bf16.msra.mxu0 0
        %706 = vmatpush.bf16.msra.mxu0 0
        %707 = vmatpush.bf16.msra.mxu0 %v695
        %708 = vmatpush.bf16.msra.mxu0 %v694
        %709 = vmatmul.bf16.gmra.mxu0 %v699
        %v710 = vpop.f32.mrf.mxu0
        %v711 = vadd.f32 0.0, %v710
        %v712 = vpop.f32.mrf.mxu0
        %713 = vdwg.mxu0
        %v714 = vld [vmem:[%s619] sm:$0xf]
        %v715 = vld [vmem:[%s619 + $0x4] sm:$0xf]
        %v716 = vld [vmem:[%s619 + $0x8] sm:$0xf]
        %v717 = vld [vmem:[%s619 + $0xc] sm:$0xf]
        %v722 = vunpack.c.l.b16 %v714
        %v723 = vunpack.c.l.b16 %v715
        %v724 = vunpack.c.l.b16 %v716
        %v725 = vunpack.c.l.b16 %v717
        %v726 = vpack.c.b16 %v723, %v722
        %v727 = vpack.c.b16 %v725, %v724
        %730 = vmatpush.bf16.msra.mxu0 0
        %731 = vmatpush.bf16.msra.mxu0 0
        %732 = vmatpush.bf16.msra.mxu0 0
        %733 = vmatpush.bf16.msra.mxu0 0
        %734 = vmatpush.bf16.msra.mxu0 0
        %735 = vmatpush.bf16.msra.mxu0 0
        %736 = vmatpush.bf16.msra.mxu0 %v727
        %737 = vmatpush.bf16.msra.mxu0 %v726
        %738 = vmatmul.bf16.gmra.mxu0 %v699
        %v739 = vpop.f32.mrf.mxu0
        %v740 = vadd.f32 0.0, %v739
        %v741 = vpop.f32.mrf.mxu0
        %742 = vdwg.mxu0
        %v743 = vld [vmem:[%s624] sm:$0xf]
        %v744 = vld [vmem:[%s624 + $0x4] sm:$0xf]
        %v745 = vld [vmem:[%s624 + $0x8] sm:$0xf]
        %v746 = vld [vmem:[%s624 + $0xc] sm:$0xf]
        %v751 = vunpack.c.l.b16 %v743
        %v752 = vunpack.c.l.b16 %v744
        %v753 = vunpack.c.l.b16 %v745
        %v754 = vunpack.c.l.b16 %v746
        %v755 = vpack.c.b16 %v752, %v751
        %v756 = vpack.c.b16 %v754, %v753
        %759 = vmatpush.bf16.msra.mxu0 0
        %760 = vmatpush.bf16.msra.mxu0 0
        %761 = vmatpush.bf16.msra.mxu0 0
        %762 = vmatpush.bf16.msra.mxu0 0
        %763 = vmatpush.bf16.msra.mxu0 0
        %764 = vmatpush.bf16.msra.mxu0 0
        %765 = vmatpush.bf16.msra.mxu0 %v756
        %766 = vmatpush.bf16.msra.mxu0 %v755
        %767 = vmatmul.bf16.gmra.mxu0 %v699
        %v768 = vpop.f32.mrf.mxu0
        %v769 = vadd.f32 0.0, %v768
        %v770 = vpop.f32.mrf.mxu0
        %771 = vdwg.mxu0
        %v772 = vld [vmem:[#allocation9] sm:$0xff]
        %v773 = vld [vmem:[#allocation11] sm:$0xff]
        %775 = vrot.lane.b32.xlu0 %v711, 112
        %v776 = vpop.permute.xlu0 %775
        %778 = vrot.lane.b32.xlu0 %v711, 16
        %v779 = vpop.permute.xlu0 %778
        %vm781 = vcmask 130048
        %v782 = vsel %vm781, %v776, %v779
        %v783 = vmul.f32 %v711, %v772
        %v784 = vmul.f32 %v782, %v773
        %v785 = vadd.f32 %v783, %v784
        %787 = vrot.lane.b32.xlu0 %v740, 112
        %v788 = vpop.permute.xlu0 %787
        %790 = vrot.lane.b32.xlu0 %v740, 16
        %v791 = vpop.permute.xlu0 %790
        %v793 = vsel %vm781, %v788, %v791
        %v794 = vmul.f32 %v740, %v772
        %v795 = vmul.f32 %v793, %v773
        %v796 = vadd.f32 %v794, %v795
        %798 = vrot.lane.b32.xlu0 %v785, 120
        %v799 = vpop.permute.xlu0 %798
        %801 = vrot.lane.b32.xlu0 %v785, 112
        %v802 = vpop.permute.xlu0 %801
        %804 = vrot.lane.b32.xlu0 %v785, 104
        %v805 = vpop.permute.xlu0 %804
        %808 = vrot.lane.b32.xlu0 %v796, 120
        %v809 = vpop.permute.xlu0 %808
        %811 = vrot.lane.b32.xlu0 %v796, 112
        %v812 = vpop.permute.xlu0 %811
        %814 = vrot.lane.b32.xlu0 %v796, 104
        %v815 = vpop.permute.xlu0 %814
        %818 = vrot.lane.b32.xlu0 %v769, 120
        %v819 = vpop.permute.xlu0 %818
        %821 = vrot.lane.b32.xlu0 %v769, 112
        %v822 = vpop.permute.xlu0 %821
        %824 = vrot.lane.b32.xlu0 %v769, 104
        %v825 = vpop.permute.xlu0 %824
        %v827 = vpack.c.bf16 %v769, %v769
        %v828 = vpack.c.bf16 %v819, %v819
        %v829 = vpack.c.bf16 %v822, %v822
        %v830 = vpack.c.bf16 %v825, %v825
        %vm831 = vcmp.gt.f32.partialorder %v796, 0.0
        %vm832 = vcmp.gt.f32.partialorder %v809, 0.0
        %vm833 = vcmp.gt.f32.partialorder %v812, 0.0
        %vm834 = vcmp.gt.f32.partialorder %v815, 0.0
        %v835 = vadd.f32 %v796, 1.0
        %v836 = vadd.f32 %v809, 1.0
        %v837 = vadd.f32 %v812, 1.0
        %v838 = vadd.f32 %v815, 1.0
        %v839 = vmin.f32 %v796, 0.0
        %v840 = vmin.f32 %v809, 0.0
        %v841 = vmin.f32 %v812, 0.0
        %v842 = vmin.f32 %v815, 0.0
        %v843 = vmul.f32 %v839, 1.442695
        %v844 = vpow.pop %v843
        %v845 = vmul.f32 %v840, 1.442695
        %v846 = vpow.pop %v845
        %v847 = vmul.f32 %v841, 1.442695
        %v848 = vpow.pop %v847
        %v849 = vmul.f32 %v842, 1.442695
        %v850 = vpow.pop %v849
        %v851 = vsel %vm831, %v835, %v844
        %v852 = vsel %vm832, %v836, %v846
        %v853 = vsel %vm833, %v837, %v848
        %v854 = vsel %vm834, %v838, %v850
        %vm855 = vcmp.gt.f32.partialorder %v785, 0.0
        %vm856 = vcmp.gt.f32.partialorder %v799, 0.0
        %vm857 = vcmp.gt.f32.partialorder %v802, 0.0
        %vm858 = vcmp.gt.f32.partialorder %v805, 0.0
        %v859 = vadd.f32 %v785, 1.0
        %v860 = vadd.f32 %v799, 1.0
        %v861 = vadd.f32 %v802, 1.0
        %v862 = vadd.f32 %v805, 1.0
        %v863 = vmin.f32 %v785, 0.0
        %v864 = vmin.f32 %v799, 0.0
        %v865 = vmin.f32 %v802, 0.0
        %v866 = vmin.f32 %v805, 0.0
        %v867 = vmul.f32 %v863, 1.442695
        %v868 = vpow.pop %v867
        %v869 = vmul.f32 %v864, 1.442695
        %v870 = vpow.pop %v869
        %v871 = vmul.f32 %v865, 1.442695
        %v872 = vpow.pop %v871
        %v873 = vmul.f32 %v866, 1.442695
        %v874 = vpow.pop %v873
        %v875 = vsel %vm855, %v859, %v868
        %v876 = vsel %vm856, %v860, %v870
        %v877 = vsel %vm857, %v861, %v872
        %v878 = vsel %vm858, %v862, %v874
        %v879 = vpack.c.bf16 %v851, %v851
        %v880 = vpack.c.bf16 %v852, %v852
        %v881 = vpack.c.bf16 %v853, %v853
        %v882 = vpack.c.bf16 %v854, %v854
        %883 = vxpose.xlu0.c.b16.start [1/8] %v879, 128
        %884 = vxpose.xlu0.c.b16.cont [2/8] 0, 128
        %885 = vxpose.xlu0.c.b16.cont [3/8] 0, 128
        %886 = vxpose.xlu0.c.b16.cont [4/8] 0, 128
        %887 = vxpose.xlu0.c.b16.cont [5/8] 0, 128
        %888 = vxpose.xlu0.c.b16.cont [6/8] 0, 128
        %889 = vxpose.xlu0.c.b16.cont [7/8] 0, 128
        %890 = vxpose.xlu0.c.b16.end [8/8] 0, 128
        %v891 = vpop.trf.xlu0
        %v892 = vpop.trf.xlu0
        %v893 = vpop.trf.xlu0
        %v894 = vpop.trf.xlu0
        %v895 = vpop.trf.xlu0
        %v896 = vpop.trf.xlu0
        %v897 = vpop.trf.xlu0
        %v898 = vpop.trf.xlu0
        %vm899 = vcmask 64512
        %v901 = vsel %vm899, %v891, 0
        %vm903 = vcmask 1043456
        %v905 = vsel %vm903, %v827, 0
        %907 = vmatpush.bf16.msra.mxu0 0
        %908 = vmatpush.bf16.msra.mxu0 0
        %909 = vmatpush.bf16.msra.mxu0 0
        %910 = vmatpush.bf16.msra.mxu0 0
        %911 = vmatpush.bf16.msra.mxu0 0
        %912 = vmatpush.bf16.msra.mxu0 0
        %913 = vmatpush.bf16.msra.mxu0 0
        %914 = vmatpush.bf16.msra.mxu0 %v905
        %915 = vmatmul.bf16.gmra.mxu0 %v901
        %v916 = vpop.f32.mrf.mxu0
        %v917 = vadd.f32 0.0, %v916
        %v918 = vpop.f32.mrf.mxu0
        %919 = vdwg.mxu0
        %920 = vxpose.xlu0.c.b16.start [1/8] %v880, 128
        %921 = vxpose.xlu0.c.b16.cont [2/8] 0, 128
        %922 = vxpose.xlu0.c.b16.cont [3/8] 0, 128
        %923 = vxpose.xlu0.c.b16.cont [4/8] 0, 128
        %924 = vxpose.xlu0.c.b16.cont [5/8] 0, 128
        %925 = vxpose.xlu0.c.b16.cont [6/8] 0, 128
        %926 = vxpose.xlu0.c.b16.cont [7/8] 0, 128
        %927 = vxpose.xlu0.c.b16.end [8/8] 0, 128
        %v928 = vpop.trf.xlu0
        %v929 = vpop.trf.xlu0
        %v930 = vpop.trf.xlu0
        %v931 = vpop.trf.xlu0
        %v932 = vpop.trf.xlu0
        %v933 = vpop.trf.xlu0
        %v934 = vpop.trf.xlu0
        %v935 = vpop.trf.xlu0
        %v937 = vsel %vm899, %v928, 0
        %v940 = vsel %vm903, %v828, 0
        %942 = vmatpush.bf16.msra.mxu0 0
        %943 = vmatpush.bf16.msra.mxu0 0
        %944 = vmatpush.bf16.msra.mxu0 0
        %945 = vmatpush.bf16.msra.mxu0 0
        %946 = vmatpush.bf16.msra.mxu0 0
        %947 = vmatpush.bf16.msra.mxu0 0
        %948 = vmatpush.bf16.msra.mxu0 0
        %949 = vmatpush.bf16.msra.mxu0 %v940
        %950 = vmatmul.bf16.gmra.mxu0 %v937
        %v951 = vpop.f32.mrf.mxu0
        %v952 = vadd.f32 0.0, %v951
        %v953 = vpop.f32.mrf.mxu0
        %954 = vdwg.mxu0
        %955 = vxpose.xlu0.c.b16.start [1/8] %v881, 128
        %956 = vxpose.xlu0.c.b16.cont [2/8] 0, 128
        %957 = vxpose.xlu0.c.b16.cont [3/8] 0, 128
        %958 = vxpose.xlu0.c.b16.cont [4/8] 0, 128
        %959 = vxpose.xlu0.c.b16.cont [5/8] 0, 128
        %960 = vxpose.xlu0.c.b16.cont [6/8] 0, 128
        %961 = vxpose.xlu0.c.b16.cont [7/8] 0, 128
        %962 = vxpose.xlu0.c.b16.end [8/8] 0, 128
        %v963 = vpop.trf.xlu0
        %v964 = vpop.trf.xlu0
        %v965 = vpop.trf.xlu0
        %v966 = vpop.trf.xlu0
        %v967 = vpop.trf.xlu0
        %v968 = vpop.trf.xlu0
        %v969 = vpop.trf.xlu0
        %v970 = vpop.trf.xlu0
        %v972 = vsel %vm899, %v963, 0
        %v975 = vsel %vm903, %v829, 0
        %977 = vmatpush.bf16.msra.mxu0 0
        %978 = vmatpush.bf16.msra.mxu0 0
        %979 = vmatpush.bf16.msra.mxu0 0
        %980 = vmatpush.bf16.msra.mxu0 0
        %981 = vmatpush.bf16.msra.mxu0 0
        %982 = vmatpush.bf16.msra.mxu0 0
        %983 = vmatpush.bf16.msra.mxu0 0
        %984 = vmatpush.bf16.msra.mxu0 %v975
        %985 = vmatmul.bf16.gmra.mxu0 %v972
        %v986 = vpop.f32.mrf.mxu0
        %v987 = vadd.f32 0.0, %v986
        %v988 = vpop.f32.mrf.mxu0
        %989 = vdwg.mxu0
        %990 = vxpose.xlu0.c.b16.start [1/8] %v882, 128
        %991 = vxpose.xlu0.c.b16.cont [2/8] 0, 128
        %992 = vxpose.xlu0.c.b16.cont [3/8] 0, 128
        %993 = vxpose.xlu0.c.b16.cont [4/8] 0, 128
        %994 = vxpose.xlu0.c.b16.cont [5/8] 0, 128
        %995 = vxpose.xlu0.c.b16.cont [6/8] 0, 128
        %996 = vxpose.xlu0.c.b16.cont [7/8] 0, 128
        %997 = vxpose.xlu0.c.b16.end [8/8] 0, 128
        %v998 = vpop.trf.xlu0
        %v999 = vpop.trf.xlu0
        %v1000 = vpop.trf.xlu0
        %v1001 = vpop.trf.xlu0
        %v1002 = vpop.trf.xlu0
        %v1003 = vpop.trf.xlu0
        %v1004 = vpop.trf.xlu0
        %v1005 = vpop.trf.xlu0
        %v1007 = vsel %vm899, %v998, 0
        %v1010 = vsel %vm903, %v830, 0
        %1012 = vmatpush.bf16.msra.mxu0 0
        %1013 = vmatpush.bf16.msra.mxu0 0
        %1014 = vmatpush.bf16.msra.mxu0 0
        %1015 = vmatpush.bf16.msra.mxu0 0
        %1016 = vmatpush.bf16.msra.mxu0 0
        %1017 = vmatpush.bf16.msra.mxu0 0
        %1018 = vmatpush.bf16.msra.mxu0 0
        %1019 = vmatpush.bf16.msra.mxu0 %v1010
        %1020 = vmatmul.bf16.gmra.mxu0 %v1007
        %v1021 = vpop.f32.mrf.mxu0
        %v1022 = vadd.f32 0.0, %v1021
        %v1023 = vpop.f32.mrf.mxu0
        %1024 = vdwg.mxu0
        %v1025 = vsel %vm899, %v851, 0.0
        %v1026 = vrot.slane %v1025, 4
        %v1027 = vadd.f32 %v1025, %v1026
        %v1028 = vrot.slane %v1027, 2
        %v1029 = vadd.f32 %v1027, %v1028
        %v1030 = vrot.slane %v1029, 1
        %v1031 = vadd.f32 %v1029, %v1030
        %v1032 = vsel %vm899, %v852, 0.0
        %v1033 = vrot.slane %v1032, 4
        %v1034 = vadd.f32 %v1032, %v1033
        %v1035 = vrot.slane %v1034, 2
        %v1036 = vadd.f32 %v1034, %v1035
        %v1037 = vrot.slane %v1036, 1
        %v1038 = vadd.f32 %v1036, %v1037
        %v1039 = vsel %vm899, %v853, 0.0
        %v1040 = vrot.slane %v1039, 4
        %v1041 = vadd.f32 %v1039, %v1040
        %v1042 = vrot.slane %v1041, 2
        %v1043 = vadd.f32 %v1041, %v1042
        %v1044 = vrot.slane %v1043, 1
        %v1045 = vadd.f32 %v1043, %v1044
        %v1046 = vsel %vm899, %v854, 0.0
        %v1047 = vrot.slane %v1046, 4
        %v1048 = vadd.f32 %v1046, %v1047
        %v1049 = vrot.slane %v1048, 2
        %v1050 = vadd.f32 %v1048, %v1049
        %v1051 = vrot.slane %v1050, 1
        %v1052 = vadd.f32 %v1050, %v1051
        %v1053 = vpack.c.bf16 %v875, %v875
        %v1054 = vpack.c.bf16 %v876, %v876
        %v1055 = vpack.c.bf16 %v877, %v877
        %v1056 = vpack.c.bf16 %v878, %v878
        %v1057 = vpack.c.bf16 %v917, %v917
        %v1058 = vpack.c.bf16 %v952, %v952
        %v1059 = vpack.c.bf16 %v987, %v987
        %v1060 = vpack.c.bf16 %v1022, %v1022
        %v1062 = vsel %vm899, %v1053, 0
        %v1065 = vsel %vm903, %v1057, 0
        %1067 = vmatpush.bf16.msra.mxu0 0
        %1068 = vmatpush.bf16.msra.mxu0 0
        %1069 = vmatpush.bf16.msra.mxu0 0
        %1070 = vmatpush.bf16.msra.mxu0 0
        %1071 = vmatpush.bf16.msra.mxu0 0
        %1072 = vmatpush.bf16.msra.mxu0 0
        %1073 = vmatpush.bf16.msra.mxu0 0
        %1074 = vmatpush.bf16.msra.mxu0 %v1065
        %1075 = vmatmul.bf16.gmra.mxu0 %v1062
        %v1076 = vpop.f32.mrf.mxu0
        %v1077 = vadd.f32 0.0, %v1076
        %v1078 = vpop.f32.mrf.mxu0
        %1079 = vdwg.mxu0
        %v1081 = vsel %vm899, %v1054, 0
        %v1084 = vsel %vm903, %v1058, 0
        %1086 = vmatpush.bf16.msra.mxu0 0
        %1087 = vmatpush.bf16.msra.mxu0 0
        %1088 = vmatpush.bf16.msra.mxu0 0
        %1089 = vmatpush.bf16.msra.mxu0 0
        %1090 = vmatpush.bf16.msra.mxu0 0
        %1091 = vmatpush.bf16.msra.mxu0 0
        %1092 = vmatpush.bf16.msra.mxu0 0
        %1093 = vmatpush.bf16.msra.mxu0 %v1084
        %1094 = vmatmul.bf16.gmra.mxu0 %v1081
        %v1095 = vpop.f32.mrf.mxu0
        %v1096 = vadd.f32 0.0, %v1095
        %v1097 = vpop.f32.mrf.mxu0
        %1098 = vdwg.mxu0
        %v1100 = vsel %vm899, %v1055, 0
        %v1103 = vsel %vm903, %v1059, 0
        %1105 = vmatpush.bf16.msra.mxu0 0
        %1106 = vmatpush.bf16.msra.mxu0 0
        %1107 = vmatpush.bf16.msra.mxu0 0
        %1108 = vmatpush.bf16.msra.mxu0 0
        %1109 = vmatpush.bf16.msra.mxu0 0
        %1110 = vmatpush.bf16.msra.mxu0 0
        %1111 = vmatpush.bf16.msra.mxu0 0
        %1112 = vmatpush.bf16.msra.mxu0 %v1103
        %1113 = vmatmul.bf16.gmra.mxu0 %v1100
        %v1114 = vpop.f32.mrf.mxu0
        %v1115 = vadd.f32 0.0, %v1114
        %v1116 = vpop.f32.mrf.mxu0
        %1117 = vdwg.mxu0
        %v1119 = vsel %vm899, %v1056, 0
        %v1122 = vsel %vm903, %v1060, 0
        %1124 = vmatpush.bf16.msra.mxu0 0
        %1125 = vmatpush.bf16.msra.mxu0 0
        %1126 = vmatpush.bf16.msra.mxu0 0
        %1127 = vmatpush.bf16.msra.mxu0 0
        %1128 = vmatpush.bf16.msra.mxu0 0
        %1129 = vmatpush.bf16.msra.mxu0 0
        %1130 = vmatpush.bf16.msra.mxu0 0
        %1131 = vmatpush.bf16.msra.mxu0 %v1122
        %1132 = vmatmul.bf16.gmra.mxu0 %v1119
        %v1133 = vpop.f32.mrf.mxu0
        %v1134 = vadd.f32 0.0, %v1133
        %v1135 = vpop.f32.mrf.mxu0
        %1136 = vdwg.mxu0
        %v1137 = vmul.f32 %v875, %v1031
        %v1138 = vmul.f32 %v876, %v1038
        %v1139 = vmul.f32 %v877, %v1045
        %v1140 = vmul.f32 %v878, %v1052
        %v1141 = vsel %vm899, %v1137, 0.0
        %1142 = vadd.xlane.f32.xlu0 %v1141
        %v1143 = vpop.xlane.xlu0 %1142
        %v1144 = vsel %vm899, %v1138, 0.0
        %1145 = vadd.xlane.f32.xlu0 %v1144
        %v1146 = vpop.xlane.xlu0 %1145
        %v1147 = vsel %vm899, %v1139, 0.0
        %1148 = vadd.xlane.f32.xlu0 %v1147
        %v1149 = vpop.xlane.xlu0 %1148
        %v1150 = vsel %vm899, %v1140, 0.0
        %1151 = vadd.xlane.f32.xlu0 %v1150
        %v1152 = vpop.xlane.xlu0 %1151
        %v1153 = vrcp.pop %v1143
        %v1154 = vmul.f32 %v1143, %v1153
        %v1155 = vsub.f32 1.0, %v1154
        %v1156 = vmul.f32 %v1153, %v1155
        %v1157 = vadd.f32 %v1153, %v1156
        %vm1158 = vweird.f32 %v1143
        %vm1159 = vweird.f32 %v1153
        %vm1160 = vmor %vm1158, %vm1159
        %v1161 = vsel %vm1160, %v1153, %v1157
        %v1162 = vand.u32 2147483647, %v1143
        %vm1163 = vcmp.eq.f32.partialorder %v1162, 8.507059e+37
        %v1164 = vand.u32 %v1143, 2147483648
        %v1165 = vor.u32 1.1754944e-38, %v1164
        %v1166 = vsel %vm1163, %v1165, %v1161
        %v1167 = vmul.f32 %v1077, %v1166
        %v1168 = vrcp.pop %v1146
        %v1169 = vmul.f32 %v1146, %v1168
        %v1170 = vsub.f32 1.0, %v1169
        %v1171 = vmul.f32 %v1168, %v1170
        %v1172 = vadd.f32 %v1168, %v1171
        %vm1173 = vweird.f32 %v1146
        %vm1174 = vweird.f32 %v1168
        %vm1175 = vmor %vm1173, %vm1174
        %v1176 = vsel %vm1175, %v1168, %v1172
        %v1177 = vand.u32 2147483647, %v1146
        %vm1178 = vcmp.eq.f32.partialorder %v1177, 8.507059e+37
        %v1179 = vand.u32 %v1146, 2147483648
        %v1180 = vor.u32 1.1754944e-38, %v1179
        %v1181 = vsel %vm1178, %v1180, %v1176
        %v1182 = vmul.f32 %v1096, %v1181
        %v1183 = vrcp.pop %v1149
        %v1184 = vmul.f32 %v1149, %v1183
        %v1185 = vsub.f32 1.0, %v1184
        %v1186 = vmul.f32 %v1183, %v1185
        %v1187 = vadd.f32 %v1183, %v1186
        %vm1188 = vweird.f32 %v1149
        %vm1189 = vweird.f32 %v1183
        %vm1190 = vmor %vm1188, %vm1189
        %v1191 = vsel %vm1190, %v1183, %v1187
        %v1192 = vand.u32 2147483647, %v1149
        %vm1193 = vcmp.eq.f32.partialorder %v1192, 8.507059e+37
        %v1194 = vand.u32 %v1149, 2147483648
        %v1195 = vor.u32 1.1754944e-38, %v1194
        %v1196 = vsel %vm1193, %v1195, %v1191
        %v1197 = vmul.f32 %v1115, %v1196
        %v1198 = vrcp.pop %v1152
        %v1199 = vmul.f32 %v1152, %v1198
        %v1200 = vsub.f32 1.0, %v1199
        %v1201 = vmul.f32 %v1198, %v1200
        %v1202 = vadd.f32 %v1198, %v1201
        %vm1203 = vweird.f32 %v1152
        %vm1204 = vweird.f32 %v1198
        %vm1205 = vmor %vm1203, %vm1204
        %v1206 = vsel %vm1205, %v1198, %v1202
        %v1207 = vand.u32 2147483647, %v1152
        %vm1208 = vcmp.eq.f32.partialorder %v1207, 8.507059e+37
        %v1209 = vand.u32 %v1152, 2147483648
        %v1210 = vor.u32 1.1754944e-38, %v1209
        %v1211 = vsel %vm1208, %v1210, %v1206
        %v1212 = vmul.f32 %v1134, %v1211
        %v1213 = vmul.f32 %v785, 0.35355338
        %v1214 = vmul.f32 %v799, 0.35355338
        %v1215 = vmul.f32 %v802, 0.35355338
        %v1216 = vmul.f32 %v805, 0.35355338
        %v1217 = vpack.c.bf16 %v1213, %v1213
        %v1218 = vpack.c.bf16 %v1214, %v1214
        %v1219 = vpack.c.bf16 %v1215, %v1215
        %v1220 = vpack.c.bf16 %v1216, %v1216
        %v1221 = vpack.c.bf16 %v796, %v796
        %v1222 = vpack.c.bf16 %v809, %v809
        %v1223 = vpack.c.bf16 %v812, %v812
        %v1224 = vpack.c.bf16 %v815, %v815
        %v1226 = vsel %vm899, %v1217, 0
        %v1229 = vsel %vm899, %v1221, 0
        %1231 = vmatpush.bf16.xpose.msra.mxu0 0
        %1232 = vmatpush.bf16.xpose.msra.mxu0 0
        %1233 = vmatpush.bf16.xpose.msra.mxu0 0
        %1234 = vmatpush.bf16.xpose.msra.mxu0 0
        %1235 = vmatpush.bf16.xpose.msra.mxu0 0
        %1236 = vmatpush.bf16.xpose.msra.mxu0 0
        %1237 = vmatpush.bf16.xpose.msra.mxu0 0
        %1238 = vmatpush.bf16.xpose.msra.mxu0 %v1229
        %1239 = vmatmul.bf16.gmra.mxu0 %v1226
        %v1240 = vpop.f32.mrf.mxu0
        %v1241 = vadd.f32 0.0, %v1240
        %v1242 = vpop.f32.mrf.mxu0
        %1243 = vdwg.mxu0
        %v1245 = vsel %vm899, %v1218, 0
        %v1248 = vsel %vm899, %v1222, 0
        %1250 = vmatpush.bf16.xpose.msra.mxu0 0
        %1251 = vmatpush.bf16.xpose.msra.mxu0 0
        %1252 = vmatpush.bf16.xpose.msra.mxu0 0
        %1253 = vmatpush.bf16.xpose.msra.mxu0 0
        %1254 = vmatpush.bf16.xpose.msra.mxu0 0
        %1255 = vmatpush.bf16.xpose.msra.mxu0 0
        %1256 = vmatpush.bf16.xpose.msra.mxu0 0
        %1257 = vmatpush.bf16.xpose.msra.mxu0 %v1248
        %1258 = vmatmul.bf16.gmra.mxu0 %v1245
        %v1259 = vpop.f32.mrf.mxu0
        %v1260 = vadd.f32 0.0, %v1259
        %v1261 = vpop.f32.mrf.mxu0
        %1262 = vdwg.mxu0
        %v1264 = vsel %vm899, %v1219, 0
        %v1267 = vsel %vm899, %v1223, 0
        %1269 = vmatpush.bf16.xpose.msra.mxu0 0
        %1270 = vmatpush.bf16.xpose.msra.mxu0 0
        %1271 = vmatpush.bf16.xpose.msra.mxu0 0
        %1272 = vmatpush.bf16.xpose.msra.mxu0 0
        %1273 = vmatpush.bf16.xpose.msra.mxu0 0
        %1274 = vmatpush.bf16.xpose.msra.mxu0 0
        %1275 = vmatpush.bf16.xpose.msra.mxu0 0
        %1276 = vmatpush.bf16.xpose.msra.mxu0 %v1267
        %1277 = vmatmul.bf16.gmra.mxu0 %v1264
        %v1278 = vpop.f32.mrf.mxu0
        %v1279 = vadd.f32 0.0, %v1278
        %v1280 = vpop.f32.mrf.mxu0
        %1281 = vdwg.mxu0
        %v1283 = vsel %vm899, %v1220, 0
        %v1286 = vsel %vm899, %v1224, 0
        %1288 = vmatpush.bf16.xpose.msra.mxu0 0
        %1289 = vmatpush.bf16.xpose.msra.mxu0 0
        %1290 = vmatpush.bf16.xpose.msra.mxu0 0
        %1291 = vmatpush.bf16.xpose.msra.mxu0 0
        %1292 = vmatpush.bf16.xpose.msra.mxu0 0
        %1293 = vmatpush.bf16.xpose.msra.mxu0 0
        %1294 = vmatpush.bf16.xpose.msra.mxu0 0
        %1295 = vmatpush.bf16.xpose.msra.mxu0 %v1286
        %1296 = vmatmul.bf16.gmra.mxu0 %v1283
        %v1297 = vpop.f32.mrf.mxu0
        %v1298 = vadd.f32 0.0, %v1297
        %v1299 = vpop.f32.mrf.mxu0
        %1300 = vdwg.mxu0
        %v1301 = vsel %vm899, %v1241, -inf
        %1302 = vmax.xlane.f32.xlu0 %v1301
        %v1303 = vpop.xlane.xlu0 %1302
        %v1304 = vsel %vm899, %v1260, -inf
        %1305 = vmax.xlane.f32.xlu0 %v1304
        %v1306 = vpop.xlane.xlu0 %1305
        %v1307 = vsel %vm899, %v1279, -inf
        %1308 = vmax.xlane.f32.xlu0 %v1307
        %v1309 = vpop.xlane.xlu0 %1308
        %v1310 = vsel %vm899, %v1298, -inf
        %1311 = vmax.xlane.f32.xlu0 %v1310
        %v1312 = vpop.xlane.xlu0 %1311
        %v1313 = vsub.f32 %v1241, %v1303
        %v1314 = vsub.f32 %v1260, %v1306
        %v1315 = vsub.f32 %v1279, %v1309
        %v1316 = vsub.f32 %v1298, %v1312
        %v1317 = vmul.f32 %v1313, 1.442695
        %v1318 = vpow.pop %v1317
        %v1319 = vmul.f32 %v1314, 1.442695
        %v1320 = vpow.pop %v1319
        %v1321 = vmul.f32 %v1315, 1.442695
        %v1322 = vpow.pop %v1321
        %v1323 = vmul.f32 %v1316, 1.442695
        %v1324 = vpow.pop %v1323
        %v1325 = vsel %vm899, %v1318, 0.0
        %1326 = vadd.xlane.f32.xlu0 %v1325
        %v1327 = vpop.xlane.xlu0 %1326
        %v1328 = vsel %vm899, %v1320, 0.0
        %1329 = vadd.xlane.f32.xlu0 %v1328
        %v1330 = vpop.xlane.xlu0 %1329
        %v1331 = vsel %vm899, %v1322, 0.0
        %1332 = vadd.xlane.f32.xlu0 %v1331
        %v1333 = vpop.xlane.xlu0 %1332
        %v1334 = vsel %vm899, %v1324, 0.0
        %1335 = vadd.xlane.f32.xlu0 %v1334
        %v1336 = vpop.xlane.xlu0 %1335
        %v1337 = vrcp.pop %v1327
        %v1338 = vmul.f32 %v1327, %v1337
        %v1339 = vsub.f32 1.0, %v1338
        %v1340 = vmul.f32 %v1337, %v1339
        %v1341 = vadd.f32 %v1337, %v1340
        %vm1342 = vweird.f32 %v1327
        %vm1343 = vweird.f32 %v1337
        %vm1344 = vmor %vm1342, %vm1343
        %v1345 = vsel %vm1344, %v1337, %v1341
        %v1346 = vand.u32 2147483647, %v1327
        %vm1347 = vcmp.eq.f32.partialorder %v1346, 8.507059e+37
        %v1348 = vand.u32 %v1327, 2147483648
        %v1349 = vor.u32 1.1754944e-38, %v1348
        %v1350 = vsel %vm1347, %v1349, %v1345
        %v1351 = vmul.f32 %v1318, %v1350
        %v1352 = vrcp.pop %v1330
        %v1353 = vmul.f32 %v1330, %v1352
        %v1354 = vsub.f32 1.0, %v1353
        %v1355 = vmul.f32 %v1352, %v1354
        %v1356 = vadd.f32 %v1352, %v1355
        %vm1357 = vweird.f32 %v1330
        %vm1358 = vweird.f32 %v1352
        %vm1359 = vmor %vm1357, %vm1358
        %v1360 = vsel %vm1359, %v1352, %v1356
        %v1361 = vand.u32 2147483647, %v1330
        %vm1362 = vcmp.eq.f32.partialorder %v1361, 8.507059e+37
        %v1363 = vand.u32 %v1330, 2147483648
        %v1364 = vor.u32 1.1754944e-38, %v1363
        %v1365 = vsel %vm1362, %v1364, %v1360
        %v1366 = vmul.f32 %v1320, %v1365
        %v1367 = vrcp.pop %v1333
        %v1368 = vmul.f32 %v1333, %v1367
        %v1369 = vsub.f32 1.0, %v1368
        %v1370 = vmul.f32 %v1367, %v1369
        %v1371 = vadd.f32 %v1367, %v1370
        %vm1372 = vweird.f32 %v1333
        %vm1373 = vweird.f32 %v1367
        %vm1374 = vmor %vm1372, %vm1373
        %v1375 = vsel %vm1374, %v1367, %v1371
        %v1376 = vand.u32 2147483647, %v1333
        %vm1377 = vcmp.eq.f32.partialorder %v1376, 8.507059e+37
        %v1378 = vand.u32 %v1333, 2147483648
        %v1379 = vor.u32 1.1754944e-38, %v1378
        %v1380 = vsel %vm1377, %v1379, %v1375
        %v1381 = vmul.f32 %v1322, %v1380
        %v1382 = vrcp.pop %v1336
        %v1383 = vmul.f32 %v1336, %v1382
        %v1384 = vsub.f32 1.0, %v1383
        %v1385 = vmul.f32 %v1382, %v1384
        %v1386 = vadd.f32 %v1382, %v1385
        %vm1387 = vweird.f32 %v1336
        %vm1388 = vweird.f32 %v1382
        %vm1389 = vmor %vm1387, %vm1388
        %v1390 = vsel %vm1389, %v1382, %v1386
        %v1391 = vand.u32 2147483647, %v1336
        %vm1392 = vcmp.eq.f32.partialorder %v1391, 8.507059e+37
        %v1393 = vand.u32 %v1336, 2147483648
        %v1394 = vor.u32 1.1754944e-38, %v1393
        %v1395 = vsel %vm1392, %v1394, %v1390
        %v1396 = vmul.f32 %v1324, %v1395
        %v1397 = vpack.c.bf16 %v1351, %v1351
        %v1398 = vpack.c.bf16 %v1366, %v1366
        %v1399 = vpack.c.bf16 %v1381, %v1381
        %v1400 = vpack.c.bf16 %v1396, %v1396
        %v1402 = vsel %vm899, %v1397, 0
        %1404 = vmatpush.bf16.msra.mxu0 0
        %1405 = vmatpush.bf16.msra.mxu0 0
        %1406 = vmatpush.bf16.msra.mxu0 0
        %1407 = vmatpush.bf16.msra.mxu0 0
        %1408 = vmatpush.bf16.msra.mxu0 0
        %1409 = vmatpush.bf16.msra.mxu0 0
        %1410 = vmatpush.bf16.msra.mxu0 0
        %1411 = vmatpush.bf16.msra.mxu0 %v905
        %1412 = vmatmul.bf16.gmra.mxu0 %v1402
        %v1413 = vpop.f32.mrf.mxu0
        %v1414 = vadd.f32 0.0, %v1413
        %v1415 = vpop.f32.mrf.mxu0
        %1416 = vdwg.mxu0
        %v1418 = vsel %vm899, %v1398, 0
        %1420 = vmatpush.bf16.msra.mxu0 0
        %1421 = vmatpush.bf16.msra.mxu0 0
        %1422 = vmatpush.bf16.msra.mxu0 0
        %1423 = vmatpush.bf16.msra.mxu0 0
        %1424 = vmatpush.bf16.msra.mxu0 0
        %1425 = vmatpush.bf16.msra.mxu0 0
        %1426 = vmatpush.bf16.msra.mxu0 0
        %1427 = vmatpush.bf16.msra.mxu0 %v940
        %1428 = vmatmul.bf16.gmra.mxu0 %v1418
        %v1429 = vpop.f32.mrf.mxu0
        %v1430 = vadd.f32 0.0, %v1429
        %v1431 = vpop.f32.mrf.mxu0
        %1432 = vdwg.mxu0
        %v1434 = vsel %vm899, %v1399, 0
        %1436 = vmatpush.bf16.msra.mxu0 0
        %1437 = vmatpush.bf16.msra.mxu0 0
        %1438 = vmatpush.bf16.msra.mxu0 0
        %1439 = vmatpush.bf16.msra.mxu0 0
        %1440 = vmatpush.bf16.msra.mxu0 0
        %1441 = vmatpush.bf16.msra.mxu0 0
        %1442 = vmatpush.bf16.msra.mxu0 0
        %1443 = vmatpush.bf16.msra.mxu0 %v975
        %1444 = vmatmul.bf16.gmra.mxu0 %v1434
        %v1445 = vpop.f32.mrf.mxu0
        %v1446 = vadd.f32 0.0, %v1445
        %v1447 = vpop.f32.mrf.mxu0
        %1448 = vdwg.mxu0
        %v1450 = vsel %vm899, %v1400, 0
        %1452 = vmatpush.bf16.msra.mxu0 0
        %1453 = vmatpush.bf16.msra.mxu0 0
        %1454 = vmatpush.bf16.msra.mxu0 0
        %1455 = vmatpush.bf16.msra.mxu0 0
        %1456 = vmatpush.bf16.msra.mxu0 0
        %1457 = vmatpush.bf16.msra.mxu0 0
        %1458 = vmatpush.bf16.msra.mxu0 0
        %1459 = vmatpush.bf16.msra.mxu0 %v1010
        %1460 = vmatmul.bf16.gmra.mxu0 %v1450
        %v1461 = vpop.f32.mrf.mxu0
        %v1462 = vadd.f32 0.0, %v1461
        %v1463 = vpop.f32.mrf.mxu0
        %1464 = vdwg.mxu0
        %1466 = vrot.lane.b32.xlu0 %v1182, 8
        %v1467 = vpop.permute.xlu0 %1466
        %1470 = vrot.lane.b32.xlu0 %v1197, 16
        %v1471 = vpop.permute.xlu0 %1470
        %1474 = vrot.lane.b32.xlu0 %v1212, 24
        %v1475 = vpop.permute.xlu0 %1474
        %v1477 = vsel %vm899, %v1167, %v1467
        %v1478 = vsel %vm781, %v1477, %v1471
        %vm1479 = vcmask 195584
        %v1480 = vsel %vm1479, %v1478, %v1475
        %1482 = vrot.lane.b32.xlu0 %v1430, 8
        %v1483 = vpop.permute.xlu0 %1482
        %1486 = vrot.lane.b32.xlu0 %v1446, 16
        %v1487 = vpop.permute.xlu0 %1486
        %1490 = vrot.lane.b32.xlu0 %v1462, 24
        %v1491 = vpop.permute.xlu0 %1490
        %v1493 = vsel %vm899, %v1414, %v1483
        %v1494 = vsel %vm781, %v1493, %v1487
        %v1495 = vsel %vm1479, %v1494, %v1491
        %v1496 = vperm.slane %v646, 5
        %v1497 = vmul.f32 %v1496, %v1480
        %v1498 = vsub.f32 1.0, %v646
        %v1499 = vperm.slane %v1498, 5
        %v1500 = vmul.f32 %v1499, %v1495
        %v1501 = vadd.f32 %v1497, %v1500
        %v1502 = vpack.c.bf16 %v1501, %v1501
        %v1503 = vld [vmem:[%s513] sm:$0xf]
        %v1504 = vld [vmem:[%s513 + $0x4] sm:$0xf]
        %v1505 = vld [vmem:[%s513 + $0x8] sm:$0xf]
        %v1506 = vld [vmem:[%s513 + $0xc] sm:$0xf]
        %v1511 = vunpack.c.l.b16 %v1503
        %v1512 = vunpack.c.l.b16 %v1504
        %v1513 = vunpack.c.l.b16 %v1505
        %v1514 = vunpack.c.l.b16 %v1506
        %v1515 = vpack.c.b16 %v1512, %v1511
        %v1516 = vpack.c.b16 %v1514, %v1513
        %v1520 = vsel %vm647, %v1502, 0
        %1522 = vmatpush.bf16.msra.mxu0 0
        %1523 = vmatpush.bf16.msra.mxu0 0
        %1524 = vmatpush.bf16.msra.mxu0 0
        %1525 = vmatpush.bf16.msra.mxu0 0
        %1526 = vmatpush.bf16.msra.mxu0 0
        %1527 = vmatpush.bf16.msra.mxu0 0
        %1528 = vmatpush.bf16.msra.mxu0 %v1516
        %1529 = vmatpush.bf16.msra.mxu0 %v1515
        %1530 = vmatmul.bf16.gmra.mxu0 %v1520
        %v1531 = vpop.f32.mrf.mxu0
        %v1532 = vadd.f32 0.0, %v1531
        %v1533 = vpop.f32.mrf.mxu0
        %1534 = vdwg.mxu0
        %v1535 = vadd.f32 %v645, %v1532
        %v1536 = vsel %vm647, %v1535, 0.0
        %1537 = vadd.xlane.f32.xlu0 %v1536
        %v1538 = vpop.xlane.xlu0 %1537
        %v1539 = vmul.f32 %v1538, %v657
        %v1540 = vsub.f32 %v1535, %v1539
        %v1541 = vmul.f32 %v1540, %v1540
        %v1542 = vsel %vm647, %v1541, 0.0
        %1543 = vadd.xlane.f32.xlu0 %v1542
        %v1544 = vpop.xlane.xlu0 %1543
        %v1545 = vmul.f32 %v1544, %v657
        %v1546 = vadd.f32 %v1545, 1e-05
        %v1547 = vrsqrt.pop %v1546
        %v1548 = vmul.f32 %v1547, %v1546
        %v1549 = vmul.f32 %v1548, %v1547
        %v1550 = vmul.f32 0.5, %v1549
        %v1551 = vsub.f32 1.5, %v1550
        %v1552 = vmul.f32 %v1547, %v1551
        %vm1553 = vweird.f32 %v1546
        %vm1554 = vweird.f32 %v1547
        %vm1555 = vmor %vm1553, %vm1554
        %v1556 = vsel %vm1555, %v1547, %v1552
        %v1557 = vmul.f32 %v1540, %v1556
        %v1558 = vperm.slane %v646, 2
        %v1559 = vmul.f32 %v1557, %v1558
        %v1560 = vperm.slane %v646, 3
        %v1561 = vadd.f32 %v1559, %v1560
        %v1562 = vpack.c.bf16 %v1561, %v1561
        %v1563 = vld [vmem:[%s523] sm:$0xf]
        %v1564 = vld [vmem:[%s523 + $0x4] sm:$0xf]
        %v1565 = vld [vmem:[%s523 + $0x8] sm:$0xf]
        %v1566 = vld [vmem:[%s523 + $0xc] sm:$0xf]
        %v1567 = vld [vmem:[%s636] sm:$0x1]
        %v1569 = vperm.slane %v1567, 0
        %v1575 = vunpack.c.l.b16 %v1563
        %v1576 = vunpack.c.l.b16 %v1564
        %v1577 = vunpack.c.l.b16 %v1565
        %v1578 = vunpack.c.l.b16 %v1566
        %v1579 = vpack.c.b16 %v1576, %v1575
        %v1580 = vpack.c.b16 %v1578, %v1577
        %v1584 = vsel %vm647, %v1562, 0
        %1586 = vmatpush.bf16.msra.mxu0 0
        %1587 = vmatpush.bf16.msra.mxu0 0
        %1588 = vmatpush.bf16.msra.mxu0 0
        %1589 = vmatpush.bf16.msra.mxu0 0
        %1590 = vmatpush.bf16.msra.mxu0 0
        %1591 = vmatpush.bf16.msra.mxu0 0
        %1592 = vmatpush.bf16.msra.mxu0 %v1580
        %1593 = vmatpush.bf16.msra.mxu0 %v1579
        %1594 = vmatmul.bf16.gmra.mxu0 %v1584
        %v1595 = vpop.f32.mrf.mxu0
        %v1596 = vadd.f32 %v1569, %v1595
        %v1597 = vpop.f32.mrf.mxu0
        %1598 = vdwg.mxu0
        %vm1599 = vcmp.gt.f32.partialorder %v1596, 20.0
        %v1600 = vmin.f32 %v1596, 20.0
        %v1601 = vmul.f32 %v1600, 1.442695
        %v1602 = vpow.pop %v1601
        %v1603 = vadd.f32 %v1602, 1.0
        %v1604 = vlog2.pop %v1603
        %v1605 = vmul.f32 %v1604, 0.6931472
        %v1606 = vsel %vm1599, %v1596, %v1605
        %v1607 = vtanh.pop %v1606
        %v1608 = vmul.f32 %v1596, %v1607
        %v1609 = vpack.c.bf16 %v1608, %v1608
        %v1610 = vld [vmem:[%s629] sm:$0xf]
        %v1611 = vld [vmem:[%s629 + $0x4] sm:$0xf]
        %v1612 = vld [vmem:[%s629 + $0x8] sm:$0xf]
        %v1613 = vld [vmem:[%s629 + $0xc] sm:$0xf]
        %v1614 = vld [vmem:[%s629 + $0x10] sm:$0xf]
        %v1615 = vld [vmem:[%s629 + $0x14] sm:$0xf]
        %v1616 = vld [vmem:[%s629 + $0x18] sm:$0xf]
        %v1617 = vld [vmem:[%s629 + $0x1c] sm:$0xf]
        %v1618 = vperm.slane %v646, 4
        %v1627 = vunpack.c.l.b16 %v1610
        %v1628 = vunpack.c.l.b16 %v1611
        %v1629 = vunpack.c.l.b16 %v1612
        %v1630 = vunpack.c.l.b16 %v1613
        %v1631 = vunpack.c.l.b16 %v1614
        %v1632 = vunpack.c.l.b16 %v1615
        %v1633 = vunpack.c.l.b16 %v1616
        %v1634 = vunpack.c.l.b16 %v1617
        %v1635 = vpack.c.b16 %v1628, %v1627
        %v1636 = vpack.c.b16 %v1630, %v1629
        %v1637 = vpack.c.b16 %v1632, %v1631
        %v1638 = vpack.c.b16 %v1634, %v1633
        %vm1643 = vcmask 523264
        %v1645 = vsel %vm1643, %v1609, 0
        %1647 = vmatpush.bf16.msra.mxu0 0
        %1648 = vmatpush.bf16.msra.mxu0 0
        %1649 = vmatpush.bf16.msra.mxu0 0
        %1650 = vmatpush.bf16.msra.mxu0 0
        %1651 = vmatpush.bf16.msra.mxu0 %v1638
        %1652 = vmatpush.bf16.msra.mxu0 %v1637
        %1653 = vmatpush.bf16.msra.mxu0 %v1636
        %1654 = vmatpush.bf16.msra.mxu0 %v1635
        %1655 = vmatmul.bf16.gmra.mxu0 %v1645
        %v1656 = vpop.f32.mrf.mxu0
        %v1657 = vadd.f32 %v1618, %v1656
        %v1658 = vpop.f32.mrf.mxu0
        %1659 = vdwg.mxu0
        %v1660 = vadd.f32 %v1535, %v1657
        %1661 = vst.msk [vmem:[#allocation2] sm:$0xff] %vm647, %v1660
        %p1662 = scmp.eq.s32.totalorder %s37, 1
        // Predicated region
        $region89: #{tpu_custom_call.1} parent=63 // pred_check
          %p1663 = pneg %p1662
        $region90: #{tpu_custom_call.1} parent=63 // pred_check_branch
          %1665 = sbr.rel (%p1663) target = $region92
        $region91: #{tpu_custom_call.1} parent=63 // pred_region
          %v1666 = vpack.c.bf16 %v1660, %v1660
          %vm1667 = vcmask 257024
          %1668 = vst.msk [vmem:[%s609] sm:$0xf] %vm1667, %v1666
        $region92: #{tpu_custom_call.1} parent=63 // pred_fallthru
          _
        %s1669 = sand.u32 %s328, 1
        %s1670 = scalar_lea.sflag [#allocation5], %s1669
        %s1671 = sand.u32 %s328, 1
        %s1672 = smul.addr %s1671, 4
        %s1673 = scalar_lea.vmem [#allocation12], %s1672
        // Predicated region
        $region93: #{tpu_custom_call.1} parent=63 // pred_check
          %p1674 = pneg %p338
        $region94: #{tpu_custom_call.1} parent=63 // pred_check_branch
          %1676 = sbr.rel (%p1674) target = $region96
        $region95: #{tpu_custom_call.1} parent=63 // pred_region
          %1678 = vsyncadd %s1670, 0
          %s1679 = smul.addr %s36, 4
          %s1680 = scalar_lea.hbm %s11, %s1679
          %s1682 = sshll.u32 %s1673, 4
          %s1683 = int_to_ptr.vmem [resolvable:$true] %s1682
          %s1684 = sshll.u32 %s1680, 4
          %s1685 = int_to_ptr.hbm [resolvable:$true] %s1684
          %1687 = dma.vmem_to_hbm [thread:$0]  %s1683, 64, %s1685, %s1670
        $region96: #{tpu_custom_call.1} parent=63 // pred_fallthru
          _
      $region64: #{tpu_custom_call.1} parent=5 // pred_fallthru
        _
      %p1688 = scmp.le.s32.totalorder 2, %s27
      // Predicated region
      $region97: #{tpu_custom_call.1} parent=5 // pred_check
        %p1689 = pneg %p1688
      $region98: #{tpu_custom_call.1} parent=5 // pred_check_branch
        %1691 = sbr.rel (%p1689) target = $region100
      $region99: #{tpu_custom_call.1} parent=5 // pred_region
        %s1692 = ssub.s32 %s27, 2
        // Predicated region
        $region101: #{tpu_custom_call.1} parent=99 // pred_check
          %p1693 = pneg %p344
        $region102: #{tpu_custom_call.1} parent=99 // pred_check_branch
          %1695 = sbr.rel (%p1693) target = $region104
        $region103: #{tpu_custom_call.1} parent=99 // pred_region
          %s1696 = sand.u32 %s329, 1
          %s1697 = scalar_lea.sflag [#allocation5], %s1696
          %s1698 = sand.u32 %s329, 1
          %s1699 = smul.addr %s1698, 4
          %s1700 = scalar_lea.vmem [#allocation12], %s1699
          %1702 = dma.done %s1697, 64
        $region104: #{tpu_custom_call.1} parent=99 // pred_fallthru
          _
      $region100: #{tpu_custom_call.1} parent=5 // pred_fallthru
        _
    $region6: #{tpu_custom_call.1} parent=1 // loop_footer
      %s31 = sadd.s32 1, %s27
    $region7: #{tpu_custom_call.1} parent=1 // loop_footer_branch
      %26 = sbr.rel target = $region3
    $region8: #{tpu_custom_call.1} parent=1 // loop_exit
      _
    %1703 = vsyncpa [#allocation4], 1
    %s1704 = scalar_lea.sflag [#allocation4], 1
    %1705 = vsyncpa %s1704, 1
    %1706 = vsyncpa [#allocation7], 1
    %s1707 = scalar_lea.sflag [#allocation7], 1
    %1708 = vsyncpa %s1707, 1
    %1709 = vsyncpa [#allocation10], 1
    %1710 = vsyncpa [#allocation5], 1
    %s1711 = scalar_lea.sflag [#allocation5], 1
    %1712 = vsyncpa %s1711, 1

</llo_original>
